<compile_context>
chip_gen: v7x
topology: tpu7x:2x2x1
jax: 0.10.0
libtpu: 0.0.40
codegen_flags: <defaults>
</compile_context>

<pallas_src>
import numpy as np
import jax
import jax.numpy as jnp
from jax.experimental import pallas as pl
from jax.experimental.pallas import tpu as pltpu


_BUDGET_BYTES = 24 << 20  # per-step working set target (in/out double buffers + scratch)


# ----------------------------------------------------------------------------- constants
def _gaussian_kernel_2d(kernel_size=3, std=1.0):
    """Mirrors the PyTorch __init__ exactly: outer(exp(-g^2), exp(-g^2)) / sum."""
    g = (np.arange(kernel_size, dtype=np.float32) - (kernel_size - 1) / 2.0) / std
    k = np.exp(-(g[None, :] ** 2) - (g[:, None] ** 2))
    return (k / k.sum()).astype(np.float32)


def _k2_consts(kernel_size, std):
    k = _gaussian_kernel_2d(kernel_size, std)
    return [[float(v) for v in row] for row in k]  # Python floats -> folded into the MACs


# --------------------------------------------------------------------------- kernel body
def _idx3(ax_a, sl_a, ax_b=None, sl_b=None):
    idx = [slice(None)] * 3
    idx[ax_a] = sl_a
    if ax_b is not None:
        idx[ax_b] = sl_b
    return tuple(idx)


def _make_body(blk, vax, hax, pad, k2, row_tiled, row_grid_axis, halo_rows,
               lead_v, lead_h, in_dtype):
    """Fused KxK depthwise conv over an aligned, halo'd VMEM copy of the tile.

    blk      : main block shape (3-D)
    vax/hax  : vertical (rows) / horizontal (cols) axes inside the block
    lead_v   : interior row offset in the scratch (8 when vax is the sublane axis)
    lead_h   : interior col offset in the scratch (128 when hax is the lane axis)
    """
    Ht = blk[vax]
    W = blk[hax]
    K = 2 * pad + 1

    def body(*refs):
        if row_tiled:
            top_ref, x_ref, bot_ref, o_ref, xe_ref = refs
        else:
            x_ref, o_ref, xe_ref = refs

        # ---- interior copy: aligned (sublane multiple of 8, lane multiple of 128),
        #      full-width unmasked store; NO full-buffer memset. ----
        xe_ref[_idx3(vax, slice(lead_v, lead_v + Ht),
                     hax, slice(lead_h, lead_h + W))] = x_ref[...]

        # ---- thin vertical halo strips (pad rows); zero at the image border. ----
        if row_tiled:
            h_id = pl.program_id(row_grid_axis)
            top = top_ref[_idx3(vax, slice(halo_rows - pad, halo_rows))]
            bot = bot_ref[_idx3(vax, slice(0, pad))]
            top = jnp.where(h_id == 0, jnp.zeros_like(top), top)
            bot = jnp.where(h_id == pl.num_programs(row_grid_axis) - 1,
                            jnp.zeros_like(bot), bot)
        else:
            zshp = list(blk)
            zshp[vax] = pad
            top = jnp.zeros(zshp, in_dtype)
            bot = jnp.zeros(zshp, in_dtype)
        xe_ref[_idx3(vax, slice(lead_v - pad, lead_v),
                     hax, slice(lead_h, lead_h + W))] = top
        xe_ref[_idx3(vax, slice(lead_v + Ht, lead_v + Ht + pad),
                     hax, slice(lead_h, lead_h + W))] = bot

        # ---- thin horizontal halo strips (pad cols, spanning all used rows). ----
        vspan = slice(lead_v - pad, lead_v + Ht + pad)
        zshp = list(blk)
        zshp[vax] = Ht + 2 * pad
        zshp[hax] = pad
        zcols = jnp.zeros(zshp, in_dtype)
        xe_ref[_idx3(vax, vspan, hax, slice(lead_h - pad, lead_h))] = zcols
        xe_ref[_idx3(vax, vspan, hax, slice(lead_h + W, lead_h + W + pad))] = zcols

        # ---- fused KxK conv: K^2 offset loads + MACs (f32 accum), one aligned store. ----
        acc = None
        for i in range(K):
            for j in range(K):
                tap = xe_ref[_idx3(vax, slice(lead_v - pad + i, lead_v - pad + i + Ht),
                                   hax, slice(lead_h - pad + j, lead_h - pad + j + W))]
                term = k2[i][j] * tap.astype(jnp.float32)
                acc = term if acc is None else acc + term
        o_ref[...] = acc.astype(o_ref.dtype)

    return body


# ------------------------------------------------------------------------------ plumbing
def _unit_bytes_wminor(ht, W, pad, itemsize):
    main = ht * W
    halo = 8 * W
    xe = (8 + ht + pad) * (128 + W + pad)
    return (4 * main + 4 * halo + xe) * itemsize


def _unit_bytes_cminor(ht, W, pad, itemsize):
    main = ht * W * 128
    halo = max(pad, 1) * W * 128
    xe = (2 * pad + ht) * (8 + W + pad) * 128
    return (4 * main + 4 * halo + xe) * itemsize


def _pick_rows(H, unit_fn, budget, forced):
    """Largest row tile (multiple of 8 dividing H) whose per-unit footprint fits budget."""
    if forced is not None:
        ok = (H % forced == 0) and (forced == H or (forced % 8 == 0 and H % 8 == 0))
        if ok:
            return int(forced)
    if H % 8 != 0 or unit_fn(H) <= budget:
        return H
    best = 8
    for ht in range(8, H, 8):
        if H % ht == 0 and unit_fn(ht) <= budget:
            best = ht
    return best


def _blur_3d(arr, *, vax, hax, pax, p_tile, Ht, pad, k2, lead_v, lead_h, halo_rows):
    shape = arr.shape
    H, W, P = shape[vax], shape[hax], shape[pax]
    n_rows = H // Ht
    row_tiled = n_rows > 1
    gp = pl.cdiv(P, p_tile)  # ragged last plane block is fine: planes never mix.
    grid = (gp, n_rows)

    blk = [0, 0, 0]
    blk[pax], blk[vax], blk[hax] = p_tile, Ht, W
    blk = tuple(blk)

    def _map(vidx_fn):
        def m(p, h):
            idx = [0, 0, 0]
            idx[pax] = p
            idx[hax] = 0
            idx[vax] = vidx_fn(h)
            return tuple(idx)
        return m

    main_spec = pl.BlockSpec(blk, _map(lambda h: h))
    in_specs = [main_spec]
    operands = [arr]
    halo_blk = blk
    if row_tiled:
        halo_blk = list(blk)
        halo_blk[vax] = halo_rows
        halo_blk = tuple(halo_blk)
        ratio = Ht // halo_rows
        max_b = H // halo_rows - 1
        top_spec = pl.BlockSpec(halo_blk, _map(lambda h: jnp.clip(h * ratio - 1, 0, max_b)))
        bot_spec = pl.BlockSpec(halo_blk, _map(lambda h: jnp.clip(h * ratio + ratio, 0, max_b)))
        in_specs = [top_spec, main_spec, bot_spec]
        operands = [arr, arr, arr]

    xe_shape = [0, 0, 0]
    xe_shape[pax] = p_tile
    xe_shape[vax] = lead_v + Ht + pad
    xe_shape[hax] = lead_h + W + pad
    xe_shape = tuple(xe_shape)

    itemsize = jnp.dtype(arr.dtype).itemsize
    blk_bytes = int(np.prod(blk)) * itemsize
    halo_bytes = int(np.prod(halo_blk)) * itemsize if row_tiled else 0
    footprint = 4 * blk_bytes + 4 * halo_bytes + int(np.prod(xe_shape)) * itemsize
    vmem_limit = int(max(32 << 20, footprint + (8 << 20)))

    body = _make_body(blk, vax, hax, pad, k2, row_tiled, 1, halo_rows,
                      lead_v, lead_h, jnp.dtype(arr.dtype))

    return pl.pallas_call(
        body,
        out_shape=jax.ShapeDtypeStruct(shape, arr.dtype),
        grid_spec=pltpu.PrefetchScalarGridSpec(
            num_scalar_prefetch=0,
            grid=grid,
            in_specs=in_specs,
            out_specs=main_spec,
            scratch_shapes=[pltpu.VMEM(xe_shape, arr.dtype)],
        ),
        compiler_params=pltpu.CompilerParams(
            dimension_semantics=("parallel", "parallel"),
            vmem_limit_bytes=vmem_limit),
    )(*operands)


def gaussian_blur(x, kernel_size=3, std=1.0, *, row_tile=None, plane_tile=None):
    """Depthwise Gaussian blur, x: (N, C, H, W) float. Same semantics as GussianBlur.forward."""
    N, C, H, W = x.shape
    pad = (kernel_size - 1) // 2
    k2 = _k2_consts(kernel_size, std)
    if pad == 0:
        return x  # 1x1 kernel with weight exactly 1.0
    P = N * C
    itemsize = jnp.dtype(x.dtype).itemsize

    # Channel-minor (lane-dense) layout when W is narrow and planes fill the lane axis.
    use_cm = (W % 128 != 0) and (P % 128 == 0)

    if use_cm:
        arr = jnp.transpose(x.reshape(P, H, W), (1, 2, 0))  # (H, W, P), planes on lanes
        unit = lambda ht: _unit_bytes_cminor(ht, W, pad, itemsize)
        Ht = _pick_rows(H, unit, _BUDGET_BYTES, row_tile) if pad <= 8 else H
        pu = max(1, min(P // 128, _BUDGET_BYTES // max(1, unit(Ht))))
        p_tile = 128 * pu
        if plane_tile is not None and plane_tile % 128 == 0 and 128 <= plane_tile <= P:
            p_tile = int(plane_tile)
        halo_rows = pad if Ht % pad == 0 else 8
        out = _blur_3d(arr, vax=0, hax=1, pax=2, p_tile=p_tile, Ht=Ht, pad=pad, k2=k2,
                       lead_v=pad, lead_h=8, halo_rows=halo_rows)
        return jnp.transpose(out, (2, 0, 1)).reshape(N, C, H, W)

    arr = x.reshape(P, H, W)  # (P, H, W), W on lanes (lane dense when W % 128 == 0)
    unit = lambda ht: _unit_bytes_wminor(ht, W, pad, itemsize)
    Ht = _pick_rows(H, unit, _BUDGET_BYTES, row_tile) if pad <= 8 else H
    p_tile = max(1, min(P, _BUDGET_BYTES // max(1, unit(Ht))))
    if plane_tile is not None and 1 <= plane_tile <= P:
        p_tile = int(plane_tile)
    out = _blur_3d(arr, vax=1, hax=2, pax=0, p_tile=p_tile, Ht=Ht, pad=pad, k2=k2,
                   lead_v=8, lead_h=128, halo_rows=8)
    return out.reshape(N, C, H, W)


# ---------------------------------------------------------------------------------- test
if __name__ == "__main__":
    def reference(x, kernel_size=3, std=1.0):
        C = x.shape[1]
        pad = (kernel_size - 1) // 2
        k = jnp.asarray(_gaussian_kernel_2d(kernel_size, std))
        w = jnp.broadcast_to(k, (C, 1, kernel_size, kernel_size)).astype(jnp.float32)
        return jax.lax.conv_general_dilated(
            x.astype(jnp.float32), w, window_strides=(1, 1),
            padding=((pad, pad), (pad, pad)),
            dimension_numbers=("NCHW", "OIHW", "NCHW"), feature_group_count=C)

    key = jax.random.PRNGKey(0)
    cases = [
        ((2, 4, 16, 16), {}),                 # main case: (P,H,W) layout, single step
        ((2, 64, 16, 16), {}),                # channel-minor lane-dense path (P=128)
        ((1, 4, 32, 16), {"row_tile": 8}),    # row tiling + halo side-inputs, (P,H,W) layout
        ((1, 128, 32, 16), {"row_tile": 8}),  # row tiling + halo, channel-minor layout
        ((2, 3, 16, 16), {"plane_tile": 4}),  # ragged (cdiv) plane grid
    ]
    for shape, kw in cases:
        key, sub = jax.random.split(key)
        x = jax.random.normal(sub, shape, dtype=jnp.float32)
        out = jax.block_until_ready(gaussian_blur(x, **kw))
        ref = reference(x)
        assert out.shape == x.shape, (out.shape, x.shape)
        assert jnp.allclose(out, ref, atol=1e-5, rtol=1e-5), f"mismatch for {shape} {kw}"
    print("KERNEL_OK")
</pallas_src>

<mosaic_0001>
module attributes {stable_mosaic.version = 11 : i64} {
  func.func @body(%arg0: i32, %arg1: i32, %arg2: memref<8x16x16xf32, #tpu.memory_space<vmem>>, %arg3: memref<8x16x16xf32, #tpu.memory_space<vmem>>, %arg4: memref<8x25x145xf32, #tpu.memory_space<vmem>>) attributes {dimension_semantics = [#tpu.dimension_semantics<parallel>, #tpu.dimension_semantics<parallel>], iteration_bounds = array<i64: 1, 1>, scalar_prefetch = 0 : i64, scratch_operands = 1 : i64, tpu.core_type = #tpu.core_type<tc>, window_params = [{transform_indices = @transform_0, window_bounds = array<i64: 8, 16, 16>}, {transform_indices = @transform_1, window_bounds = array<i64: 8, 16, 16>}]} {
    %c0 = arith.constant 0 : index
    %c0_0 = arith.constant 0 : index
    %c0_1 = arith.constant 0 : index
    %0 = vector.load %arg2[%c0, %c0_0, %c0_1] : memref<8x16x16xf32, #tpu.memory_space<vmem>>, vector<8x16x16xf32>
    %c0_2 = arith.constant 0 : index
    %c8 = arith.constant 8 : index
    %c128 = arith.constant 128 : index
    %1 = vector.load %arg4[%c0_2, %c8, %c128] : memref<8x25x145xf32, #tpu.memory_space<vmem>>, vector<8x16x16xf32>
    tpu.vector_store %arg4[%c0_2, %c8, %c128], %0 {strides = array<i32>} : memref<8x25x145xf32, #tpu.memory_space<vmem>>, vector<8x16x16xf32>,
    %cst = arith.constant 0.000000e+00 : f32
    %2 = vector.broadcast %cst : f32 to vector<8x1x16xf32>
    %cst_3 = arith.constant 0.000000e+00 : f32
    %3 = vector.broadcast %cst_3 : f32 to vector<8x1x16xf32>
    %c0_4 = arith.constant 0 : index
    %c7 = arith.constant 7 : index
    %c128_5 = arith.constant 128 : index
    %4 = vector.load %arg4[%c0_4, %c7, %c128_5] : memref<8x25x145xf32, #tpu.memory_space<vmem>>, vector<8x1x16xf32>
    tpu.vector_store %arg4[%c0_4, %c7, %c128_5], %2 {strides = array<i32>} : memref<8x25x145xf32, #tpu.memory_space<vmem>>, vector<8x1x16xf32>,
    %c0_6 = arith.constant 0 : index
    %c24 = arith.constant 24 : index
    %c128_7 = arith.constant 128 : index
    %5 = vector.load %arg4[%c0_6, %c24, %c128_7] : memref<8x25x145xf32, #tpu.memory_space<vmem>>, vector<8x1x16xf32>
    tpu.vector_store %arg4[%c0_6, %c24, %c128_7], %3 {strides = array<i32>} : memref<8x25x145xf32, #tpu.memory_space<vmem>>, vector<8x1x16xf32>,
    %cst_8 = arith.constant 0.000000e+00 : f32
    %6 = vector.broadcast %cst_8 : f32 to vector<8x18x1xf32>
    %c0_9 = arith.constant 0 : index
    %c7_10 = arith.constant 7 : index
    %c127 = arith.constant 127 : index
    %7 = vector.load %arg4[%c0_9, %c7_10, %c127] : memref<8x25x145xf32, #tpu.memory_space<vmem>>, vector<8x18x1xf32>
    tpu.vector_store %arg4[%c0_9, %c7_10, %c127], %6 {strides = array<i32>} : memref<8x25x145xf32, #tpu.memory_space<vmem>>, vector<8x18x1xf32>,
    %c0_11 = arith.constant 0 : index
    %c7_12 = arith.constant 7 : index
    %c144 = arith.constant 144 : index
    %8 = vector.load %arg4[%c0_11, %c7_12, %c144] : memref<8x25x145xf32, #tpu.memory_space<vmem>>, vector<8x18x1xf32>
    tpu.vector_store %arg4[%c0_11, %c7_12, %c144], %6 {strides = array<i32>} : memref<8x25x145xf32, #tpu.memory_space<vmem>>, vector<8x18x1xf32>,
    %c0_13 = arith.constant 0 : index
    %c7_14 = arith.constant 7 : index
    %c127_15 = arith.constant 127 : index
    %9 = vector.load %arg4[%c0_13, %c7_14, %c127_15] : memref<8x25x145xf32, #tpu.memory_space<vmem>>, vector<8x16x16xf32>
    %cst_16 = arith.constant 0.0449192263 : f32
    %10 = vector.broadcast %cst_16 : f32 to vector<8x16x16xf32>
    %11 = arith.mulf %10, %9 : vector<8x16x16xf32>
    %c0_17 = arith.constant 0 : index
    %c7_18 = arith.constant 7 : index
    %c128_19 = arith.constant 128 : index
    %12 = vector.load %arg4[%c0_17, %c7_18, %c128_19] : memref<8x25x145xf32, #tpu.memory_space<vmem>>, vector<8x16x16xf32>
    %cst_20 = arith.constant 0.122103117 : f32
    %13 = vector.broadcast %cst_20 : f32 to vector<8x16x16xf32>
    %14 = arith.mulf %13, %12 : vector<8x16x16xf32>
    %15 = arith.addf %11, %14 : vector<8x16x16xf32>
    %c0_21 = arith.constant 0 : index
    %c7_22 = arith.constant 7 : index
    %c129 = arith.constant 129 : index
    %16 = vector.load %arg4[%c0_21, %c7_22, %c129] : memref<8x25x145xf32, #tpu.memory_space<vmem>>, vector<8x16x16xf32>
    %cst_23 = arith.constant 0.0449192263 : f32
    %17 = vector.broadcast %cst_23 : f32 to vector<8x16x16xf32>
    %18 = arith.mulf %17, %16 : vector<8x16x16xf32>
    %19 = arith.addf %15, %18 : vector<8x16x16xf32>
    %c0_24 = arith.constant 0 : index
    %c8_25 = arith.constant 8 : index
    %c127_26 = arith.constant 127 : index
    %20 = vector.load %arg4[%c0_24, %c8_25, %c127_26] : memref<8x25x145xf32, #tpu.memory_space<vmem>>, vector<8x16x16xf32>
    %cst_27 = arith.constant 0.122103117 : f32
    %21 = vector.broadcast %cst_27 : f32 to vector<8x16x16xf32>
    %22 = arith.mulf %21, %20 : vector<8x16x16xf32>
    %23 = arith.addf %19, %22 : vector<8x16x16xf32>
    %c0_28 = arith.constant 0 : index
    %c8_29 = arith.constant 8 : index
    %c128_30 = arith.constant 128 : index
    %24 = vector.load %arg4[%c0_28, %c8_29, %c128_30] : memref<8x25x145xf32, #tpu.memory_space<vmem>>, vector<8x16x16xf32>
    %cst_31 = arith.constant 0.3319107 : f32
    %25 = vector.broadcast %cst_31 : f32 to vector<8x16x16xf32>
    %26 = arith.mulf %25, %24 : vector<8x16x16xf32>
    %27 = arith.addf %23, %26 : vector<8x16x16xf32>
    %c0_32 = arith.constant 0 : index
    %c8_33 = arith.constant 8 : index
    %c129_34 = arith.constant 129 : index
    %28 = vector.load %arg4[%c0_32, %c8_33, %c129_34] : memref<8x25x145xf32, #tpu.memory_space<vmem>>, vector<8x16x16xf32>
    %cst_35 = arith.constant 0.122103117 : f32
    %29 = vector.broadcast %cst_35 : f32 to vector<8x16x16xf32>
    %30 = arith.mulf %29, %28 : vector<8x16x16xf32>
    %31 = arith.addf %27, %30 : vector<8x16x16xf32>
    %c0_36 = arith.constant 0 : index
    %c9 = arith.constant 9 : index
    %c127_37 = arith.constant 127 : index
    %32 = vector.load %arg4[%c0_36, %c9, %c127_37] : memref<8x25x145xf32, #tpu.memory_space<vmem>>, vector<8x16x16xf32>
    %cst_38 = arith.constant 0.0449192263 : f32
    %33 = vector.broadcast %cst_38 : f32 to vector<8x16x16xf32>
    %34 = arith.mulf %33, %32 : vector<8x16x16xf32>
    %35 = arith.addf %31, %34 : vector<8x16x16xf32>
    %c0_39 = arith.constant 0 : index
    %c9_40 = arith.constant 9 : index
    %c128_41 = arith.constant 128 : index
    %36 = vector.load %arg4[%c0_39, %c9_40, %c128_41] : memref<8x25x145xf32, #tpu.memory_space<vmem>>, vector<8x16x16xf32>
    %cst_42 = arith.constant 0.122103117 : f32
    %37 = vector.broadcast %cst_42 : f32 to vector<8x16x16xf32>
    %38 = arith.mulf %37, %36 : vector<8x16x16xf32>
    %39 = arith.addf %35, %38 : vector<8x16x16xf32>
    %c0_43 = arith.constant 0 : index
    %c9_44 = arith.constant 9 : index
    %c129_45 = arith.constant 129 : index
    %40 = vector.load %arg4[%c0_43, %c9_44, %c129_45] : memref<8x25x145xf32, #tpu.memory_space<vmem>>, vector<8x16x16xf32>
    %cst_46 = arith.constant 0.0449192263 : f32
    %41 = vector.broadcast %cst_46 : f32 to vector<8x16x16xf32>
    %42 = arith.mulf %41, %40 : vector<8x16x16xf32>
    %43 = arith.addf %39, %42 : vector<8x16x16xf32>
    %c0_47 = arith.constant 0 : index
    %c0_48 = arith.constant 0 : index
    %c0_49 = arith.constant 0 : index
    %44 = vector.load %arg3[%c0_47, %c0_48, %c0_49] : memref<8x16x16xf32, #tpu.memory_space<vmem>>, vector<8x16x16xf32>
    tpu.vector_store %arg3[%c0_47, %c0_48, %c0_49], %43 {strides = array<i32>} : memref<8x16x16xf32, #tpu.memory_space<vmem>>, vector<8x16x16xf32>,
    return
  }
  func.func @transform_0(%arg0: i32, %arg1: i32) -> (i32, i32, i32) {
    %c0_i32 = arith.constant 0 : i32
    %c0_i32_0 = arith.constant 0 : i32
    return %arg0, %arg1, %c0_i32 : i32, i32, i32
  }
  func.func @transform_1(%arg0: i32, %arg1: i32) -> (i32, i32, i32) {
    %c0_i32 = arith.constant 0 : i32
    %c0_i32_0 = arith.constant 0 : i32
    return %arg0, %arg1, %c0_i32 : i32, i32, i32
  }
}

</mosaic_0001>

<llo_original>
// kernel: tpu_custom_call.1
$region0: #{tpu_custom_call.1}
  #allocation0 [shape = 'u32[]', space=smem, size = 0x4, offset = 0x4, fixed_abs, tag = 'smem constant byte address 0x4 - core index']
  #allocation1 [shape = 'u32[144,128]{1,0:T(1,128)}', space=vmem, size = 0x12000, scoped, tag = 'internal scratch']
  #allocation2 [shape = 'f32[8,25,145]{2,1,0:T(8,128)}', space=vmem, size = 0x40000, scoped, tag = 'scratch operand']
  %s0 = inlined_call_operand.hbm [shape: f32[8,16,16], index: 0, kind: input, shape index: {}]
  %s1 = inlined_call_operand.hbm [shape: f32[8,16,16], index: 1, kind: output, shape index: {}]
  %s2 = sld [smem:[#allocation0]]
  $region18: #{tpu_custom_call.1} parent=0
    _
  %s4 = ssub.s32 1, %s2
  %s5 = scalar_select 0, %s4, %s2
  $region1: #{tpu_custom_call.1} parent=0
    #allocation3 [shape = 'u8[65536]{0}', space=vmem, size = 0x10000, scoped, tag = 'input window, operand 0, single buffered']
    #allocation4 [shape = 's32[1]{0}', space=sflag, size = 0x4, scoped, tag = 'scoped memory for tpu_custom_call.1']
    #allocation5 [shape = 's32[1]{0}', space=sflag, size = 0x4, scoped, tag = 'scoped memory for tpu_custom_call.1']
    #allocation6 [shape = 'u8[65536]{0}', space=vmem, size = 0x10000, scoped, tag = 'output window, operand 0, single buffered']
    %6 = vsyncpa [#allocation4], 0
    %7 = vsyncpa [#allocation5], 0
    // Predicated region
    $region2: #{tpu_custom_call.1} parent=1 // pred_check
      _
    $region3: #{tpu_custom_call.1} parent=1 // pred_check_branch
      %9 = sbr.rel (0) target = $region5
    $region4: #{tpu_custom_call.1} parent=1 // pred_region
      %s11 = ssub.s32 2048, 2048
      %12 = vsyncadd [#allocation4], %s11
      %s13 = sshll.u32 [#allocation3], 4
      %s14 = int_to_ptr.vmem [resolvable:$true] %s13
      %19 = dma.hbm_to_vmem [thread:$0]  %s0, 2048, %s14, [#allocation4], 128, 128, 8
    $region5: #{tpu_custom_call.1} parent=1 // pred_fallthru
      _
    // Predicated region
    $region6: #{tpu_custom_call.1} parent=1 // pred_check
      _
    $region7: #{tpu_custom_call.1} parent=1 // pred_check_branch
      %21 = sbr.rel (0) target = $region9
    $region8: #{tpu_custom_call.1} parent=1 // pred_region
      %22 = dma.done [#allocation4], 2048
    $region9: #{tpu_custom_call.1} parent=1 // pred_fallthru
      _
    %v23 = vld [vmem:[#allocation3] sm:$0xff]
    %v24 = vld [vmem:[#allocation3 + $0x8] sm:$0xff]
    %v25 = vld [vmem:[#allocation3 + $0x10] sm:$0xff]
    %v26 = vld [vmem:[#allocation3 + $0x18] sm:$0xff]
    %v27 = vld [vmem:[#allocation3 + $0x20] sm:$0xff]
    %v28 = vld [vmem:[#allocation3 + $0x28] sm:$0xff]
    %v29 = vld [vmem:[#allocation3 + $0x30] sm:$0xff]
    %v30 = vld [vmem:[#allocation3 + $0x38] sm:$0xff]
    %v31 = vld [vmem:[#allocation3 + $0x40] sm:$0xff]
    %v32 = vld [vmem:[#allocation3 + $0x48] sm:$0xff]
    %v33 = vld [vmem:[#allocation3 + $0x50] sm:$0xff]
    %v34 = vld [vmem:[#allocation3 + $0x58] sm:$0xff]
    %v35 = vld [vmem:[#allocation3 + $0x60] sm:$0xff]
    %v36 = vld [vmem:[#allocation3 + $0x68] sm:$0xff]
    %v37 = vld [vmem:[#allocation3 + $0x70] sm:$0xff]
    %v38 = vld [vmem:[#allocation3 + $0x78] sm:$0xff]
    %vm39 = vcmask 130048
    %40 = vst.msk [vmem:[#allocation2 + $0x18] sm:$0xff] %vm39, %v23
    %41 = vst.msk [vmem:[#allocation2 + $0x28] sm:$0xff] %vm39, %v24
    %42 = vst.msk [vmem:[#allocation2 + $0x58] sm:$0xff] %vm39, %v25
    %43 = vst.msk [vmem:[#allocation2 + $0x68] sm:$0xff] %vm39, %v26
    %44 = vst.msk [vmem:[#allocation2 + $0x98] sm:$0xff] %vm39, %v27
    %45 = vst.msk [vmem:[#allocation2 + $0xa8] sm:$0xff] %vm39, %v28
    %46 = vst.msk [vmem:[#allocation2 + $0xd8] sm:$0xff] %vm39, %v29
    %47 = vst.msk [vmem:[#allocation2 + $0xe8] sm:$0xff] %vm39, %v30
    %48 = vst.msk [vmem:[#allocation2 + $0x118] sm:$0xff] %vm39, %v31
    %49 = vst.msk [vmem:[#allocation2 + $0x128] sm:$0xff] %vm39, %v32
    %50 = vst.msk [vmem:[#allocation2 + $0x158] sm:$0xff] %vm39, %v33
    %51 = vst.msk [vmem:[#allocation2 + $0x168] sm:$0xff] %vm39, %v34
    %52 = vst.msk [vmem:[#allocation2 + $0x198] sm:$0xff] %vm39, %v35
    %53 = vst.msk [vmem:[#allocation2 + $0x1a8] sm:$0xff] %vm39, %v36
    %54 = vst.msk [vmem:[#allocation2 + $0x1d8] sm:$0xff] %vm39, %v37
    %55 = vst.msk [vmem:[#allocation2 + $0x1e8] sm:$0xff] %vm39, %v38
    %vm56 = vcmask 122880
    %57 = vst.msk [vmem:[#allocation2 + $0xf] sm:$0x1] %vm56, 0.0
    %58 = vst.msk [vmem:[#allocation2 + $0x4f] sm:$0x1] %vm56, 0.0
    %59 = vst.msk [vmem:[#allocation2 + $0x8f] sm:$0x1] %vm56, 0.0
    %60 = vst.msk [vmem:[#allocation2 + $0xcf] sm:$0x1] %vm56, 0.0
    %61 = vst.msk [vmem:[#allocation2 + $0x10f] sm:$0x1] %vm56, 0.0
    %62 = vst.msk [vmem:[#allocation2 + $0x14f] sm:$0x1] %vm56, 0.0
    %63 = vst.msk [vmem:[#allocation2 + $0x18f] sm:$0x1] %vm56, 0.0
    %64 = vst.msk [vmem:[#allocation2 + $0x1cf] sm:$0x1] %vm56, 0.0
    %65 = vst.msk [vmem:[#allocation2 + $0x38] sm:$0x1] %vm56, 0.0
    %66 = vst.msk [vmem:[#allocation2 + $0x78] sm:$0x1] %vm56, 0.0
    %67 = vst.msk [vmem:[#allocation2 + $0xb8] sm:$0x1] %vm56, 0.0
    %68 = vst.msk [vmem:[#allocation2 + $0xf8] sm:$0x1] %vm56, 0.0
    %69 = vst.msk [vmem:[#allocation2 + $0x138] sm:$0x1] %vm56, 0.0
    %70 = vst.msk [vmem:[#allocation2 + $0x178] sm:$0x1] %vm56, 0.0
    %71 = vst.msk [vmem:[#allocation2 + $0x1b8] sm:$0x1] %vm56, 0.0
    %72 = vst.msk [vmem:[#allocation2 + $0x1f8] sm:$0x1] %vm56, 0.0
    %vm73 = vcmask 1048575
    %74 = vst.msk [vmem:[#allocation2] sm:$0x80] %vm73, 0.0
    %vm75 = vcmask 1048568
    %76 = vst.msk [vmem:[#allocation2 + $0x10] sm:$0xff] %vm75, 0.0
    %77 = vst.msk [vmem:[#allocation2 + $0x20] sm:$0xff] %vm75, 0.0
    %vm78 = vcmask 1041400
    %79 = vst.msk [vmem:[#allocation2 + $0x30] sm:$0x1] %vm78, 0.0
    %80 = vst.msk [vmem:[#allocation2 + $0x40] sm:$0x80] %vm73, 0.0
    %81 = vst.msk [vmem:[#allocation2 + $0x50] sm:$0xff] %vm75, 0.0
    %82 = vst.msk [vmem:[#allocation2 + $0x60] sm:$0xff] %vm75, 0.0
    %83 = vst.msk [vmem:[#allocation2 + $0x70] sm:$0x1] %vm78, 0.0
    %84 = vst.msk [vmem:[#allocation2 + $0x80] sm:$0x80] %vm73, 0.0
    %85 = vst.msk [vmem:[#allocation2 + $0x90] sm:$0xff] %vm75, 0.0
    %86 = vst.msk [vmem:[#allocation2 + $0xa0] sm:$0xff] %vm75, 0.0
    %87 = vst.msk [vmem:[#allocation2 + $0xb0] sm:$0x1] %vm78, 0.0
    %88 = vst.msk [vmem:[#allocation2 + $0xc0] sm:$0x80] %vm73, 0.0
    %89 = vst.msk [vmem:[#allocation2 + $0xd0] sm:$0xff] %vm75, 0.0
    %90 = vst.msk [vmem:[#allocation2 + $0xe0] sm:$0xff] %vm75, 0.0
    %91 = vst.msk [vmem:[#allocation2 + $0xf0] sm:$0x1] %vm78, 0.0
    %92 = vst.msk [vmem:[#allocation2 + $0x100] sm:$0x80] %vm73, 0.0
    %93 = vst.msk [vmem:[#allocation2 + $0x110] sm:$0xff] %vm75, 0.0
    %94 = vst.msk [vmem:[#allocation2 + $0x120] sm:$0xff] %vm75, 0.0
    %95 = vst.msk [vmem:[#allocation2 + $0x130] sm:$0x1] %vm78, 0.0
    %96 = vst.msk [vmem:[#allocation2 + $0x140] sm:$0x80] %vm73, 0.0
    %97 = vst.msk [vmem:[#allocation2 + $0x150] sm:$0xff] %vm75, 0.0
    %98 = vst.msk [vmem:[#allocation2 + $0x160] sm:$0xff] %vm75, 0.0
    %99 = vst.msk [vmem:[#allocation2 + $0x170] sm:$0x1] %vm78, 0.0
    %100 = vst.msk [vmem:[#allocation2 + $0x180] sm:$0x80] %vm73, 0.0
    %101 = vst.msk [vmem:[#allocation2 + $0x190] sm:$0xff] %vm75, 0.0
    %102 = vst.msk [vmem:[#allocation2 + $0x1a0] sm:$0xff] %vm75, 0.0
    %103 = vst.msk [vmem:[#allocation2 + $0x1b0] sm:$0x1] %vm78, 0.0
    %104 = vst.msk [vmem:[#allocation2 + $0x1c0] sm:$0x80] %vm73, 0.0
    %105 = vst.msk [vmem:[#allocation2 + $0x1d0] sm:$0xff] %vm75, 0.0
    %106 = vst.msk [vmem:[#allocation2 + $0x1e0] sm:$0xff] %vm75, 0.0
    %107 = vst.msk [vmem:[#allocation2 + $0x1f0] sm:$0x1] %vm78, 0.0
    %vm108 = vcmask 138375
    %109 = vst.msk [vmem:[#allocation2 + $0x8] sm:$0x80] %vm108, 0.0
    %vm110 = vcmask 138368
    %111 = vst.msk [vmem:[#allocation2 + $0x18] sm:$0xff] %vm110, 0.0
    %112 = vst.msk [vmem:[#allocation2 + $0x28] sm:$0xff] %vm110, 0.0
    %vm113 = vcmask 131200
    %114 = vst.msk [vmem:[#allocation2 + $0x38] sm:$0x1] %vm113, 0.0
    %115 = vst.msk [vmem:[#allocation2 + $0x48] sm:$0x80] %vm108, 0.0
    %116 = vst.msk [vmem:[#allocation2 + $0x58] sm:$0xff] %vm110, 0.0
    %117 = vst.msk [vmem:[#allocation2 + $0x68] sm:$0xff] %vm110, 0.0
    %118 = vst.msk [vmem:[#allocation2 + $0x78] sm:$0x1] %vm113, 0.0
    %119 = vst.msk [vmem:[#allocation2 + $0x88] sm:$0x80] %vm108, 0.0
    %120 = vst.msk [vmem:[#allocation2 + $0x98] sm:$0xff] %vm110, 0.0
    %121 = vst.msk [vmem:[#allocation2 + $0xa8] sm:$0xff] %vm110, 0.0
    %122 = vst.msk [vmem:[#allocation2 + $0xb8] sm:$0x1] %vm113, 0.0
    %123 = vst.msk [vmem:[#allocation2 + $0xc8] sm:$0x80] %vm108, 0.0
    %124 = vst.msk [vmem:[#allocation2 + $0xd8] sm:$0xff] %vm110, 0.0
    %125 = vst.msk [vmem:[#allocation2 + $0xe8] sm:$0xff] %vm110, 0.0
    %126 = vst.msk [vmem:[#allocation2 + $0xf8] sm:$0x1] %vm113, 0.0
    %127 = vst.msk [vmem:[#allocation2 + $0x108] sm:$0x80] %vm108, 0.0
    %128 = vst.msk [vmem:[#allocation2 + $0x118] sm:$0xff] %vm110, 0.0
    %129 = vst.msk [vmem:[#allocation2 + $0x128] sm:$0xff] %vm110, 0.0
    %130 = vst.msk [vmem:[#allocation2 + $0x138] sm:$0x1] %vm113, 0.0
    %131 = vst.msk [vmem:[#allocation2 + $0x148] sm:$0x80] %vm108, 0.0
    %132 = vst.msk [vmem:[#allocation2 + $0x158] sm:$0xff] %vm110, 0.0
    %133 = vst.msk [vmem:[#allocation2 + $0x168] sm:$0xff] %vm110, 0.0
    %134 = vst.msk [vmem:[#allocation2 + $0x178] sm:$0x1] %vm113, 0.0
    %135 = vst.msk [vmem:[#allocation2 + $0x188] sm:$0x80] %vm108, 0.0
    %136 = vst.msk [vmem:[#allocation2 + $0x198] sm:$0xff] %vm110, 0.0
    %137 = vst.msk [vmem:[#allocation2 + $0x1a8] sm:$0xff] %vm110, 0.0
    %138 = vst.msk [vmem:[#allocation2 + $0x1b8] sm:$0x1] %vm113, 0.0
    %139 = vst.msk [vmem:[#allocation2 + $0x1c8] sm:$0x80] %vm108, 0.0
    %140 = vst.msk [vmem:[#allocation2 + $0x1d8] sm:$0xff] %vm110, 0.0
    %141 = vst.msk [vmem:[#allocation2 + $0x1e8] sm:$0xff] %vm110, 0.0
    %142 = vst.msk [vmem:[#allocation2 + $0x1f8] sm:$0x1] %vm113, 0.0
    %v143 = vld [vmem:[#allocation2] sm:$0x80]
    %v144 = vld [vmem:[#allocation2 + $0x8] sm:$0x80]
    %v145 = vld [vmem:[#allocation2 + $0x10] sm:$0xff]
    %v146 = vld [vmem:[#allocation2 + $0x18] sm:$0xff]
    %v147 = vld [vmem:[#allocation2 + $0x20] sm:$0x7f]
    %v148 = vld [vmem:[#allocation2 + $0x28] sm:$0x7f]
    %v149 = vld [vmem:[#allocation2 + $0x40] sm:$0x80]
    %v150 = vld [vmem:[#allocation2 + $0x48] sm:$0x80]
    %v151 = vld [vmem:[#allocation2 + $0x50] sm:$0xff]
    %v152 = vld [vmem:[#allocation2 + $0x58] sm:$0xff]
    %v153 = vld [vmem:[#allocation2 + $0x60] sm:$0x7f]
    %v154 = vld [vmem:[#allocation2 + $0x68] sm:$0x7f]
    %v155 = vld [vmem:[#allocation2 + $0x80] sm:$0x80]
    %v156 = vld [vmem:[#allocation2 + $0x88] sm:$0x80]
    %v157 = vld [vmem:[#allocation2 + $0x90] sm:$0xff]
    %v158 = vld [vmem:[#allocation2 + $0x98] sm:$0xff]
    %v159 = vld [vmem:[#allocation2 + $0xa0] sm:$0x7f]
    %v160 = vld [vmem:[#allocation2 + $0xa8] sm:$0x7f]
    %v161 = vld [vmem:[#allocation2 + $0xc0] sm:$0x80]
    %v162 = vld [vmem:[#allocation2 + $0xc8] sm:$0x80]
    %v163 = vld [vmem:[#allocation2 + $0xd0] sm:$0xff]
    %v164 = vld [vmem:[#allocation2 + $0xd8] sm:$0xff]
    %v165 = vld [vmem:[#allocation2 + $0xe0] sm:$0x7f]
    %v166 = vld [vmem:[#allocation2 + $0xe8] sm:$0x7f]
    %v167 = vld [vmem:[#allocation2 + $0x100] sm:$0x80]
    %v168 = vld [vmem:[#allocation2 + $0x108] sm:$0x80]
    %v169 = vld [vmem:[#allocation2 + $0x110] sm:$0xff]
    %v170 = vld [vmem:[#allocation2 + $0x118] sm:$0xff]
    %v171 = vld [vmem:[#allocation2 + $0x120] sm:$0x7f]
    %v172 = vld [vmem:[#allocation2 + $0x128] sm:$0x7f]
    %v173 = vld [vmem:[#allocation2 + $0x140] sm:$0x80]
    %v174 = vld [vmem:[#allocation2 + $0x148] sm:$0x80]
    %v175 = vld [vmem:[#allocation2 + $0x150] sm:$0xff]
    %v176 = vld [vmem:[#allocation2 + $0x158] sm:$0xff]
    %v177 = vld [vmem:[#allocation2 + $0x160] sm:$0x7f]
    %v178 = vld [vmem:[#allocation2 + $0x168] sm:$0x7f]
    %v179 = vld [vmem:[#allocation2 + $0x180] sm:$0x80]
    %v180 = vld [vmem:[#allocation2 + $0x188] sm:$0x80]
    %v181 = vld [vmem:[#allocation2 + $0x190] sm:$0xff]
    %v182 = vld [vmem:[#allocation2 + $0x198] sm:$0xff]
    %v183 = vld [vmem:[#allocation2 + $0x1a0] sm:$0x7f]
    %v184 = vld [vmem:[#allocation2 + $0x1a8] sm:$0x7f]
    %v185 = vld [vmem:[#allocation2 + $0x1c0] sm:$0x80]
    %v186 = vld [vmem:[#allocation2 + $0x1c8] sm:$0x80]
    %v187 = vld [vmem:[#allocation2 + $0x1d0] sm:$0xff]
    %v188 = vld [vmem:[#allocation2 + $0x1d8] sm:$0xff]
    %v189 = vld [vmem:[#allocation2 + $0x1e0] sm:$0x7f]
    %v190 = vld [vmem:[#allocation2 + $0x1e8] sm:$0x7f]
    %v191 = vmul.f32 %v143, 0.044919226
    %v192 = vmul.f32 %v144, 0.044919226
    %v193 = vmul.f32 %v145, 0.044919226
    %v194 = vmul.f32 %v146, 0.044919226
    %v195 = vmul.f32 %v147, 0.044919226
    %v196 = vmul.f32 %v148, 0.044919226
    %v197 = vmul.f32 %v149, 0.044919226
    %v198 = vmul.f32 %v150, 0.044919226
    %v199 = vmul.f32 %v151, 0.044919226
    %v200 = vmul.f32 %v152, 0.044919226
    %v201 = vmul.f32 %v153, 0.044919226
    %v202 = vmul.f32 %v154, 0.044919226
    %v203 = vmul.f32 %v155, 0.044919226
    %v204 = vmul.f32 %v156, 0.044919226
    %v205 = vmul.f32 %v157, 0.044919226
    %v206 = vmul.f32 %v158, 0.044919226
    %v207 = vmul.f32 %v159, 0.044919226
    %v208 = vmul.f32 %v160, 0.044919226
    %v209 = vmul.f32 %v161, 0.044919226
    %v210 = vmul.f32 %v162, 0.044919226
    %v211 = vmul.f32 %v163, 0.044919226
    %v212 = vmul.f32 %v164, 0.044919226
    %v213 = vmul.f32 %v165, 0.044919226
    %v214 = vmul.f32 %v166, 0.044919226
    %v215 = vmul.f32 %v167, 0.044919226
    %v216 = vmul.f32 %v168, 0.044919226
    %v217 = vmul.f32 %v169, 0.044919226
    %v218 = vmul.f32 %v170, 0.044919226
    %v219 = vmul.f32 %v171, 0.044919226
    %v220 = vmul.f32 %v172, 0.044919226
    %v221 = vmul.f32 %v173, 0.044919226
    %v222 = vmul.f32 %v174, 0.044919226
    %v223 = vmul.f32 %v175, 0.044919226
    %v224 = vmul.f32 %v176, 0.044919226
    %v225 = vmul.f32 %v177, 0.044919226
    %v226 = vmul.f32 %v178, 0.044919226
    %v227 = vmul.f32 %v179, 0.044919226
    %v228 = vmul.f32 %v180, 0.044919226
    %v229 = vmul.f32 %v181, 0.044919226
    %v230 = vmul.f32 %v182, 0.044919226
    %v231 = vmul.f32 %v183, 0.044919226
    %v232 = vmul.f32 %v184, 0.044919226
    %v233 = vmul.f32 %v185, 0.044919226
    %v234 = vmul.f32 %v186, 0.044919226
    %v235 = vmul.f32 %v187, 0.044919226
    %v236 = vmul.f32 %v188, 0.044919226
    %v237 = vmul.f32 %v189, 0.044919226
    %v238 = vmul.f32 %v190, 0.044919226
    %v239 = vmul.f32 %v144, 0.12210312
    %v240 = vmul.f32 %v146, 0.12210312
    %v241 = vmul.f32 %v148, 0.12210312
    %v242 = vmul.f32 %v150, 0.12210312
    %v243 = vmul.f32 %v152, 0.12210312
    %v244 = vmul.f32 %v154, 0.12210312
    %v245 = vmul.f32 %v156, 0.12210312
    %v246 = vmul.f32 %v158, 0.12210312
    %v247 = vmul.f32 %v160, 0.12210312
    %v248 = vmul.f32 %v162, 0.12210312
    %v249 = vmul.f32 %v164, 0.12210312
    %v250 = vmul.f32 %v166, 0.12210312
    %v251 = vmul.f32 %v168, 0.12210312
    %v252 = vmul.f32 %v170, 0.12210312
    %v253 = vmul.f32 %v172, 0.12210312
    %v254 = vmul.f32 %v174, 0.12210312
    %v255 = vmul.f32 %v176, 0.12210312
    %v256 = vmul.f32 %v178, 0.12210312
    %v257 = vmul.f32 %v180, 0.12210312
    %v258 = vmul.f32 %v182, 0.12210312
    %v259 = vmul.f32 %v184, 0.12210312
    %v260 = vmul.f32 %v186, 0.12210312
    %v261 = vmul.f32 %v188, 0.12210312
    %v262 = vmul.f32 %v190, 0.12210312
    %287 = vrot.lane.b32.xlu0 %v239, 127
    %v288 = vpop.permute.xlu0 %287
    %289 = vrot.lane.b32.xlu0 %v240, 127
    %v290 = vpop.permute.xlu0 %289
    %291 = vrot.lane.b32.xlu0 %v241, 127
    %v292 = vpop.permute.xlu0 %291
    %293 = vrot.lane.b32.xlu0 %v242, 127
    %v294 = vpop.permute.xlu0 %293
    %295 = vrot.lane.b32.xlu0 %v243, 127
    %v296 = vpop.permute.xlu0 %295
    %297 = vrot.lane.b32.xlu0 %v244, 127
    %v298 = vpop.permute.xlu0 %297
    %299 = vrot.lane.b32.xlu0 %v245, 127
    %v300 = vpop.permute.xlu0 %299
    %301 = vrot.lane.b32.xlu0 %v246, 127
    %v302 = vpop.permute.xlu0 %301
    %303 = vrot.lane.b32.xlu0 %v247, 127
    %v304 = vpop.permute.xlu0 %303
    %305 = vrot.lane.b32.xlu0 %v248, 127
    %v306 = vpop.permute.xlu0 %305
    %307 = vrot.lane.b32.xlu0 %v249, 127
    %v308 = vpop.permute.xlu0 %307
    %309 = vrot.lane.b32.xlu0 %v250, 127
    %v310 = vpop.permute.xlu0 %309
    %311 = vrot.lane.b32.xlu0 %v251, 127
    %v312 = vpop.permute.xlu0 %311
    %313 = vrot.lane.b32.xlu0 %v252, 127
    %v314 = vpop.permute.xlu0 %313
    %315 = vrot.lane.b32.xlu0 %v253, 127
    %v316 = vpop.permute.xlu0 %315
    %317 = vrot.lane.b32.xlu0 %v254, 127
    %v318 = vpop.permute.xlu0 %317
    %319 = vrot.lane.b32.xlu0 %v255, 127
    %v320 = vpop.permute.xlu0 %319
    %321 = vrot.lane.b32.xlu0 %v256, 127
    %v322 = vpop.permute.xlu0 %321
    %323 = vrot.lane.b32.xlu0 %v257, 127
    %v324 = vpop.permute.xlu0 %323
    %325 = vrot.lane.b32.xlu0 %v258, 127
    %v326 = vpop.permute.xlu0 %325
    %327 = vrot.lane.b32.xlu0 %v259, 127
    %v328 = vpop.permute.xlu0 %327
    %329 = vrot.lane.b32.xlu0 %v260, 127
    %v330 = vpop.permute.xlu0 %329
    %331 = vrot.lane.b32.xlu0 %v261, 127
    %v332 = vpop.permute.xlu0 %331
    %333 = vrot.lane.b32.xlu0 %v262, 127
    %v334 = vpop.permute.xlu0 %333
    %v359 = vadd.f32 %v191, %v288
    %v360 = vadd.f32 %v192, %v288
    %v361 = vadd.f32 %v193, %v290
    %v362 = vadd.f32 %v194, %v290
    %v363 = vadd.f32 %v195, %v292
    %v364 = vadd.f32 %v196, %v292
    %v365 = vadd.f32 %v197, %v294
    %v366 = vadd.f32 %v198, %v294
    %v367 = vadd.f32 %v199, %v296
    %v368 = vadd.f32 %v200, %v296
    %v369 = vadd.f32 %v201, %v298
    %v370 = vadd.f32 %v202, %v298
    %v371 = vadd.f32 %v203, %v300
    %v372 = vadd.f32 %v204, %v300
    %v373 = vadd.f32 %v205, %v302
    %v374 = vadd.f32 %v206, %v302
    %v375 = vadd.f32 %v207, %v304
    %v376 = vadd.f32 %v208, %v304
    %v377 = vadd.f32 %v209, %v306
    %v378 = vadd.f32 %v210, %v306
    %v379 = vadd.f32 %v211, %v308
    %v380 = vadd.f32 %v212, %v308
    %v381 = vadd.f32 %v213, %v310
    %v382 = vadd.f32 %v214, %v310
    %v383 = vadd.f32 %v215, %v312
    %v384 = vadd.f32 %v216, %v312
    %v385 = vadd.f32 %v217, %v314
    %v386 = vadd.f32 %v218, %v314
    %v387 = vadd.f32 %v219, %v316
    %v388 = vadd.f32 %v220, %v316
    %v389 = vadd.f32 %v221, %v318
    %v390 = vadd.f32 %v222, %v318
    %v391 = vadd.f32 %v223, %v320
    %v392 = vadd.f32 %v224, %v320
    %v393 = vadd.f32 %v225, %v322
    %v394 = vadd.f32 %v226, %v322
    %v395 = vadd.f32 %v227, %v324
    %v396 = vadd.f32 %v228, %v324
    %v397 = vadd.f32 %v229, %v326
    %v398 = vadd.f32 %v230, %v326
    %v399 = vadd.f32 %v231, %v328
    %v400 = vadd.f32 %v232, %v328
    %v401 = vadd.f32 %v233, %v330
    %v402 = vadd.f32 %v234, %v330
    %v403 = vadd.f32 %v235, %v332
    %v404 = vadd.f32 %v236, %v332
    %v405 = vadd.f32 %v237, %v334
    %v406 = vadd.f32 %v238, %v334
    %431 = vrot.lane.b32.xlu0 %v192, 126
    %v432 = vpop.permute.xlu0 %431
    %433 = vrot.lane.b32.xlu0 %v194, 126
    %v434 = vpop.permute.xlu0 %433
    %435 = vrot.lane.b32.xlu0 %v196, 126
    %v436 = vpop.permute.xlu0 %435
    %437 = vrot.lane.b32.xlu0 %v198, 126
    %v438 = vpop.permute.xlu0 %437
    %439 = vrot.lane.b32.xlu0 %v200, 126
    %v440 = vpop.permute.xlu0 %439
    %441 = vrot.lane.b32.xlu0 %v202, 126
    %v442 = vpop.permute.xlu0 %441
    %443 = vrot.lane.b32.xlu0 %v204, 126
    %v444 = vpop.permute.xlu0 %443
    %445 = vrot.lane.b32.xlu0 %v206, 126
    %v446 = vpop.permute.xlu0 %445
    %447 = vrot.lane.b32.xlu0 %v208, 126
    %v448 = vpop.permute.xlu0 %447
    %449 = vrot.lane.b32.xlu0 %v210, 126
    %v450 = vpop.permute.xlu0 %449
    %451 = vrot.lane.b32.xlu0 %v212, 126
    %v452 = vpop.permute.xlu0 %451
    %453 = vrot.lane.b32.xlu0 %v214, 126
    %v454 = vpop.permute.xlu0 %453
    %455 = vrot.lane.b32.xlu0 %v216, 126
    %v456 = vpop.permute.xlu0 %455
    %457 = vrot.lane.b32.xlu0 %v218, 126
    %v458 = vpop.permute.xlu0 %457
    %459 = vrot.lane.b32.xlu0 %v220, 126
    %v460 = vpop.permute.xlu0 %459
    %461 = vrot.lane.b32.xlu0 %v222, 126
    %v462 = vpop.permute.xlu0 %461
    %463 = vrot.lane.b32.xlu0 %v224, 126
    %v464 = vpop.permute.xlu0 %463
    %465 = vrot.lane.b32.xlu0 %v226, 126
    %v466 = vpop.permute.xlu0 %465
    %467 = vrot.lane.b32.xlu0 %v228, 126
    %v468 = vpop.permute.xlu0 %467
    %469 = vrot.lane.b32.xlu0 %v230, 126
    %v470 = vpop.permute.xlu0 %469
    %471 = vrot.lane.b32.xlu0 %v232, 126
    %v472 = vpop.permute.xlu0 %471
    %473 = vrot.lane.b32.xlu0 %v234, 126
    %v474 = vpop.permute.xlu0 %473
    %475 = vrot.lane.b32.xlu0 %v236, 126
    %v476 = vpop.permute.xlu0 %475
    %477 = vrot.lane.b32.xlu0 %v238, 126
    %v478 = vpop.permute.xlu0 %477
    %v503 = vadd.f32 %v359, %v432
    %v504 = vadd.f32 %v360, %v432
    %v505 = vadd.f32 %v361, %v434
    %v506 = vadd.f32 %v362, %v434
    %v507 = vadd.f32 %v363, %v436
    %v508 = vadd.f32 %v364, %v436
    %v509 = vadd.f32 %v365, %v438
    %v510 = vadd.f32 %v366, %v438
    %v511 = vadd.f32 %v367, %v440
    %v512 = vadd.f32 %v368, %v440
    %v513 = vadd.f32 %v369, %v442
    %v514 = vadd.f32 %v370, %v442
    %v515 = vadd.f32 %v371, %v444
    %v516 = vadd.f32 %v372, %v444
    %v517 = vadd.f32 %v373, %v446
    %v518 = vadd.f32 %v374, %v446
    %v519 = vadd.f32 %v375, %v448
    %v520 = vadd.f32 %v376, %v448
    %v521 = vadd.f32 %v377, %v450
    %v522 = vadd.f32 %v378, %v450
    %v523 = vadd.f32 %v379, %v452
    %v524 = vadd.f32 %v380, %v452
    %v525 = vadd.f32 %v381, %v454
    %v526 = vadd.f32 %v382, %v454
    %v527 = vadd.f32 %v383, %v456
    %v528 = vadd.f32 %v384, %v456
    %v529 = vadd.f32 %v385, %v458
    %v530 = vadd.f32 %v386, %v458
    %v531 = vadd.f32 %v387, %v460
    %v532 = vadd.f32 %v388, %v460
    %v533 = vadd.f32 %v389, %v462
    %v534 = vadd.f32 %v390, %v462
    %v535 = vadd.f32 %v391, %v464
    %v536 = vadd.f32 %v392, %v464
    %v537 = vadd.f32 %v393, %v466
    %v538 = vadd.f32 %v394, %v466
    %v539 = vadd.f32 %v395, %v468
    %v540 = vadd.f32 %v396, %v468
    %v541 = vadd.f32 %v397, %v470
    %v542 = vadd.f32 %v398, %v470
    %v543 = vadd.f32 %v399, %v472
    %v544 = vadd.f32 %v400, %v472
    %v545 = vadd.f32 %v401, %v474
    %v546 = vadd.f32 %v402, %v474
    %v547 = vadd.f32 %v403, %v476
    %v548 = vadd.f32 %v404, %v476
    %v549 = vadd.f32 %v405, %v478
    %v550 = vadd.f32 %v406, %v478
    %v551 = vld [vmem:[#allocation2 + $0x20] sm:$0xff]
    %v552 = vld [vmem:[#allocation2 + $0x28] sm:$0xff]
    %v553 = vld [vmem:[#allocation2 + $0x60] sm:$0xff]
    %v554 = vld [vmem:[#allocation2 + $0x68] sm:$0xff]
    %v555 = vld [vmem:[#allocation2 + $0xa0] sm:$0xff]
    %v556 = vld [vmem:[#allocation2 + $0xa8] sm:$0xff]
    %v557 = vld [vmem:[#allocation2 + $0xe0] sm:$0xff]
    %v558 = vld [vmem:[#allocation2 + $0xe8] sm:$0xff]
    %v559 = vld [vmem:[#allocation2 + $0x120] sm:$0xff]
    %v560 = vld [vmem:[#allocation2 + $0x128] sm:$0xff]
    %v561 = vld [vmem:[#allocation2 + $0x160] sm:$0xff]
    %v562 = vld [vmem:[#allocation2 + $0x168] sm:$0xff]
    %v563 = vld [vmem:[#allocation2 + $0x1a0] sm:$0xff]
    %v564 = vld [vmem:[#allocation2 + $0x1a8] sm:$0xff]
    %v565 = vld [vmem:[#allocation2 + $0x1e0] sm:$0xff]
    %v566 = vld [vmem:[#allocation2 + $0x1e8] sm:$0xff]
    %v567 = vmul.f32 %v145, 0.12210312
    %v568 = vmul.f32 %v551, 0.12210312
    %v569 = vmul.f32 %v552, 0.12210312
    %v570 = vmul.f32 %v151, 0.12210312
    %v571 = vmul.f32 %v553, 0.12210312
    %v572 = vmul.f32 %v554, 0.12210312
    %v573 = vmul.f32 %v157, 0.12210312
    %v574 = vmul.f32 %v555, 0.12210312
    %v575 = vmul.f32 %v556, 0.12210312
    %v576 = vmul.f32 %v163, 0.12210312
    %v577 = vmul.f32 %v557, 0.12210312
    %v578 = vmul.f32 %v558, 0.12210312
    %v579 = vmul.f32 %v169, 0.12210312
    %v580 = vmul.f32 %v559, 0.12210312
    %v581 = vmul.f32 %v560, 0.12210312
    %v582 = vmul.f32 %v175, 0.12210312
    %v583 = vmul.f32 %v561, 0.12210312
    %v584 = vmul.f32 %v562, 0.12210312
    %v585 = vmul.f32 %v181, 0.12210312
    %v586 = vmul.f32 %v563, 0.12210312
    %v587 = vmul.f32 %v564, 0.12210312
    %v588 = vmul.f32 %v187, 0.12210312
    %v589 = vmul.f32 %v565, 0.12210312
    %v590 = vmul.f32 %v566, 0.12210312
    %vm615 = vcmask 1046528
    %v616 = vrot.slane %v567, 1
    %v617 = vrot.slane %v240, 1
    %v618 = vrot.slane %v568, 1
    %v619 = vsel %vm615, %v616, %v618
    %v620 = vrot.slane %v569, 1
    %v621 = vsel %vm615, %v617, %v620
    %v622 = vrot.slane %v570, 1
    %v623 = vrot.slane %v243, 1
    %v624 = vrot.slane %v571, 1
    %v625 = vsel %vm615, %v622, %v624
    %v626 = vrot.slane %v572, 1
    %v627 = vsel %vm615, %v623, %v626
    %v628 = vrot.slane %v573, 1
    %v629 = vrot.slane %v246, 1
    %v630 = vrot.slane %v574, 1
    %v631 = vsel %vm615, %v628, %v630
    %v632 = vrot.slane %v575, 1
    %v633 = vsel %vm615, %v629, %v632
    %v634 = vrot.slane %v576, 1
    %v635 = vrot.slane %v249, 1
    %v636 = vrot.slane %v577, 1
    %v637 = vsel %vm615, %v634, %v636
    %v638 = vrot.slane %v578, 1
    %v639 = vsel %vm615, %v635, %v638
    %v640 = vrot.slane %v579, 1
    %v641 = vrot.slane %v252, 1
    %v642 = vrot.slane %v580, 1
    %v643 = vsel %vm615, %v640, %v642
    %v644 = vrot.slane %v581, 1
    %v645 = vsel %vm615, %v641, %v644
    %v646 = vrot.slane %v582, 1
    %v647 = vrot.slane %v255, 1
    %v648 = vrot.slane %v583, 1
    %v649 = vsel %vm615, %v646, %v648
    %v650 = vrot.slane %v584, 1
    %v651 = vsel %vm615, %v647, %v650
    %v652 = vrot.slane %v585, 1
    %v653 = vrot.slane %v258, 1
    %v654 = vrot.slane %v586, 1
    %v655 = vsel %vm615, %v652, %v654
    %v656 = vrot.slane %v587, 1
    %v657 = vsel %vm615, %v653, %v656
    %v658 = vrot.slane %v588, 1
    %v659 = vrot.slane %v261, 1
    %v660 = vrot.slane %v589, 1
    %v661 = vsel %vm615, %v658, %v660
    %v662 = vrot.slane %v590, 1
    %v663 = vsel %vm615, %v659, %v662
    %v712 = vadd.f32 %v503, %v616
    %v713 = vadd.f32 %v504, %v617
    %v714 = vadd.f32 %v505, %v619
    %v715 = vadd.f32 %v506, %v621
    %v716 = vadd.f32 %v507, %v618
    %v717 = vadd.f32 %v508, %v620
    %v718 = vadd.f32 %v509, %v622
    %v719 = vadd.f32 %v510, %v623
    %v720 = vadd.f32 %v511, %v625
    %v721 = vadd.f32 %v512, %v627
    %v722 = vadd.f32 %v513, %v624
    %v723 = vadd.f32 %v514, %v626
    %v724 = vadd.f32 %v515, %v628
    %v725 = vadd.f32 %v516, %v629
    %v726 = vadd.f32 %v517, %v631
    %v727 = vadd.f32 %v518, %v633
    %v728 = vadd.f32 %v519, %v630
    %v729 = vadd.f32 %v520, %v632
    %v730 = vadd.f32 %v521, %v634
    %v731 = vadd.f32 %v522, %v635
    %v732 = vadd.f32 %v523, %v637
    %v733 = vadd.f32 %v524, %v639
    %v734 = vadd.f32 %v525, %v636
    %v735 = vadd.f32 %v526, %v638
    %v736 = vadd.f32 %v527, %v640
    %v737 = vadd.f32 %v528, %v641
    %v738 = vadd.f32 %v529, %v643
    %v739 = vadd.f32 %v530, %v645
    %v740 = vadd.f32 %v531, %v642
    %v741 = vadd.f32 %v532, %v644
    %v742 = vadd.f32 %v533, %v646
    %v743 = vadd.f32 %v534, %v647
    %v744 = vadd.f32 %v535, %v649
    %v745 = vadd.f32 %v536, %v651
    %v746 = vadd.f32 %v537, %v648
    %v747 = vadd.f32 %v538, %v650
    %v748 = vadd.f32 %v539, %v652
    %v749 = vadd.f32 %v540, %v653
    %v750 = vadd.f32 %v541, %v655
    %v751 = vadd.f32 %v542, %v657
    %v752 = vadd.f32 %v543, %v654
    %v753 = vadd.f32 %v544, %v656
    %v754 = vadd.f32 %v545, %v658
    %v755 = vadd.f32 %v546, %v659
    %v756 = vadd.f32 %v547, %v661
    %v757 = vadd.f32 %v548, %v663
    %v758 = vadd.f32 %v549, %v660
    %v759 = vadd.f32 %v550, %v662
    %v760 = vmul.f32 %v146, 0.3319107
    %v761 = vmul.f32 %v552, 0.3319107
    %v762 = vmul.f32 %v152, 0.3319107
    %v763 = vmul.f32 %v554, 0.3319107
    %v764 = vmul.f32 %v158, 0.3319107
    %v765 = vmul.f32 %v556, 0.3319107
    %v766 = vmul.f32 %v164, 0.3319107
    %v767 = vmul.f32 %v558, 0.3319107
    %v768 = vmul.f32 %v170, 0.3319107
    %v769 = vmul.f32 %v560, 0.3319107
    %v770 = vmul.f32 %v176, 0.3319107
    %v771 = vmul.f32 %v562, 0.3319107
    %v772 = vmul.f32 %v182, 0.3319107
    %v773 = vmul.f32 %v564, 0.3319107
    %v774 = vmul.f32 %v188, 0.3319107
    %v775 = vmul.f32 %v566, 0.3319107
    %v792 = vrot.slane %v760, 1
    %v793 = vrot.slane %v761, 1
    %v794 = vsel %vm615, %v792, %v793
    %v795 = vrot.slane %v762, 1
    %v796 = vrot.slane %v763, 1
    %v797 = vsel %vm615, %v795, %v796
    %v798 = vrot.slane %v764, 1
    %v799 = vrot.slane %v765, 1
    %v800 = vsel %vm615, %v798, %v799
    %v801 = vrot.slane %v766, 1
    %v802 = vrot.slane %v767, 1
    %v803 = vsel %vm615, %v801, %v802
    %v804 = vrot.slane %v768, 1
    %v805 = vrot.slane %v769, 1
    %v806 = vsel %vm615, %v804, %v805
    %v807 = vrot.slane %v770, 1
    %v808 = vrot.slane %v771, 1
    %v809 = vsel %vm615, %v807, %v808
    %v810 = vrot.slane %v772, 1
    %v811 = vrot.slane %v773, 1
    %v812 = vsel %vm615, %v810, %v811
    %v813 = vrot.slane %v774, 1
    %v814 = vrot.slane %v775, 1
    %v815 = vsel %vm615, %v813, %v814
    %816 = vrot.lane.b32.xlu0 %v792, 127
    %v817 = vpop.permute.xlu0 %816
    %818 = vrot.lane.b32.xlu0 %v794, 127
    %v819 = vpop.permute.xlu0 %818
    %820 = vrot.lane.b32.xlu0 %v793, 127
    %v821 = vpop.permute.xlu0 %820
    %822 = vrot.lane.b32.xlu0 %v795, 127
    %v823 = vpop.permute.xlu0 %822
    %824 = vrot.lane.b32.xlu0 %v797, 127
    %v825 = vpop.permute.xlu0 %824
    %826 = vrot.lane.b32.xlu0 %v796, 127
    %v827 = vpop.permute.xlu0 %826
    %828 = vrot.lane.b32.xlu0 %v798, 127
    %v829 = vpop.permute.xlu0 %828
    %830 = vrot.lane.b32.xlu0 %v800, 127
    %v831 = vpop.permute.xlu0 %830
    %832 = vrot.lane.b32.xlu0 %v799, 127
    %v833 = vpop.permute.xlu0 %832
    %834 = vrot.lane.b32.xlu0 %v801, 127
    %v835 = vpop.permute.xlu0 %834
    %836 = vrot.lane.b32.xlu0 %v803, 127
    %v837 = vpop.permute.xlu0 %836
    %838 = vrot.lane.b32.xlu0 %v802, 127
    %v839 = vpop.permute.xlu0 %838
    %840 = vrot.lane.b32.xlu0 %v804, 127
    %v841 = vpop.permute.xlu0 %840
    %842 = vrot.lane.b32.xlu0 %v806, 127
    %v843 = vpop.permute.xlu0 %842
    %844 = vrot.lane.b32.xlu0 %v805, 127
    %v845 = vpop.permute.xlu0 %844
    %846 = vrot.lane.b32.xlu0 %v807, 127
    %v847 = vpop.permute.xlu0 %846
    %848 = vrot.lane.b32.xlu0 %v809, 127
    %v849 = vpop.permute.xlu0 %848
    %850 = vrot.lane.b32.xlu0 %v808, 127
    %v851 = vpop.permute.xlu0 %850
    %852 = vrot.lane.b32.xlu0 %v810, 127
    %v853 = vpop.permute.xlu0 %852
    %854 = vrot.lane.b32.xlu0 %v812, 127
    %v855 = vpop.permute.xlu0 %854
    %856 = vrot.lane.b32.xlu0 %v811, 127
    %v857 = vpop.permute.xlu0 %856
    %858 = vrot.lane.b32.xlu0 %v813, 127
    %v859 = vpop.permute.xlu0 %858
    %860 = vrot.lane.b32.xlu0 %v815, 127
    %v861 = vpop.permute.xlu0 %860
    %862 = vrot.lane.b32.xlu0 %v814, 127
    %v863 = vpop.permute.xlu0 %862
    %v888 = vadd.f32 %v712, %v817
    %v889 = vadd.f32 %v713, %v817
    %v890 = vadd.f32 %v714, %v819
    %v891 = vadd.f32 %v715, %v819
    %v892 = vadd.f32 %v716, %v821
    %v893 = vadd.f32 %v717, %v821
    %v894 = vadd.f32 %v718, %v823
    %v895 = vadd.f32 %v719, %v823
    %v896 = vadd.f32 %v720, %v825
    %v897 = vadd.f32 %v721, %v825
    %v898 = vadd.f32 %v722, %v827
    %v899 = vadd.f32 %v723, %v827
    %v900 = vadd.f32 %v724, %v829
    %v901 = vadd.f32 %v725, %v829
    %v902 = vadd.f32 %v726, %v831
    %v903 = vadd.f32 %v727, %v831
    %v904 = vadd.f32 %v728, %v833
    %v905 = vadd.f32 %v729, %v833
    %v906 = vadd.f32 %v730, %v835
    %v907 = vadd.f32 %v731, %v835
    %v908 = vadd.f32 %v732, %v837
    %v909 = vadd.f32 %v733, %v837
    %v910 = vadd.f32 %v734, %v839
    %v911 = vadd.f32 %v735, %v839
    %v912 = vadd.f32 %v736, %v841
    %v913 = vadd.f32 %v737, %v841
    %v914 = vadd.f32 %v738, %v843
    %v915 = vadd.f32 %v739, %v843
    %v916 = vadd.f32 %v740, %v845
    %v917 = vadd.f32 %v741, %v845
    %v918 = vadd.f32 %v742, %v847
    %v919 = vadd.f32 %v743, %v847
    %v920 = vadd.f32 %v744, %v849
    %v921 = vadd.f32 %v745, %v849
    %v922 = vadd.f32 %v746, %v851
    %v923 = vadd.f32 %v747, %v851
    %v924 = vadd.f32 %v748, %v853
    %v925 = vadd.f32 %v749, %v853
    %v926 = vadd.f32 %v750, %v855
    %v927 = vadd.f32 %v751, %v855
    %v928 = vadd.f32 %v752, %v857
    %v929 = vadd.f32 %v753, %v857
    %v930 = vadd.f32 %v754, %v859
    %v931 = vadd.f32 %v755, %v859
    %v932 = vadd.f32 %v756, %v861
    %v933 = vadd.f32 %v757, %v861
    %v934 = vadd.f32 %v758, %v863
    %v935 = vadd.f32 %v759, %v863
    %936 = vrot.lane.b32.xlu0 %v617, 126
    %v937 = vpop.permute.xlu0 %936
    %938 = vrot.lane.b32.xlu0 %v621, 126
    %v939 = vpop.permute.xlu0 %938
    %940 = vrot.lane.b32.xlu0 %v620, 126
    %v941 = vpop.permute.xlu0 %940
    %942 = vrot.lane.b32.xlu0 %v623, 126
    %v943 = vpop.permute.xlu0 %942
    %944 = vrot.lane.b32.xlu0 %v627, 126
    %v945 = vpop.permute.xlu0 %944
    %946 = vrot.lane.b32.xlu0 %v626, 126
    %v947 = vpop.permute.xlu0 %946
    %948 = vrot.lane.b32.xlu0 %v629, 126
    %v949 = vpop.permute.xlu0 %948
    %950 = vrot.lane.b32.xlu0 %v633, 126
    %v951 = vpop.permute.xlu0 %950
    %952 = vrot.lane.b32.xlu0 %v632, 126
    %v953 = vpop.permute.xlu0 %952
    %954 = vrot.lane.b32.xlu0 %v635, 126
    %v955 = vpop.permute.xlu0 %954
    %956 = vrot.lane.b32.xlu0 %v639, 126
    %v957 = vpop.permute.xlu0 %956
    %958 = vrot.lane.b32.xlu0 %v638, 126
    %v959 = vpop.permute.xlu0 %958
    %960 = vrot.lane.b32.xlu0 %v641, 126
    %v961 = vpop.permute.xlu0 %960
    %962 = vrot.lane.b32.xlu0 %v645, 126
    %v963 = vpop.permute.xlu0 %962
    %964 = vrot.lane.b32.xlu0 %v644, 126
    %v965 = vpop.permute.xlu0 %964
    %966 = vrot.lane.b32.xlu0 %v647, 126
    %v967 = vpop.permute.xlu0 %966
    %968 = vrot.lane.b32.xlu0 %v651, 126
    %v969 = vpop.permute.xlu0 %968
    %970 = vrot.lane.b32.xlu0 %v650, 126
    %v971 = vpop.permute.xlu0 %970
    %972 = vrot.lane.b32.xlu0 %v653, 126
    %v973 = vpop.permute.xlu0 %972
    %974 = vrot.lane.b32.xlu0 %v657, 126
    %v975 = vpop.permute.xlu0 %974
    %976 = vrot.lane.b32.xlu0 %v656, 126
    %v977 = vpop.permute.xlu0 %976
    %978 = vrot.lane.b32.xlu0 %v659, 126
    %v979 = vpop.permute.xlu0 %978
    %980 = vrot.lane.b32.xlu0 %v663, 126
    %v981 = vpop.permute.xlu0 %980
    %982 = vrot.lane.b32.xlu0 %v662, 126
    %v983 = vpop.permute.xlu0 %982
    %v1008 = vadd.f32 %v888, %v937
    %v1009 = vadd.f32 %v889, %v937
    %v1010 = vadd.f32 %v890, %v939
    %v1011 = vadd.f32 %v891, %v939
    %v1012 = vadd.f32 %v892, %v941
    %v1013 = vadd.f32 %v893, %v941
    %v1014 = vadd.f32 %v894, %v943
    %v1015 = vadd.f32 %v895, %v943
    %v1016 = vadd.f32 %v896, %v945
    %v1017 = vadd.f32 %v897, %v945
    %v1018 = vadd.f32 %v898, %v947
    %v1019 = vadd.f32 %v899, %v947
    %v1020 = vadd.f32 %v900, %v949
    %v1021 = vadd.f32 %v901, %v949
    %v1022 = vadd.f32 %v902, %v951
    %v1023 = vadd.f32 %v903, %v951
    %v1024 = vadd.f32 %v904, %v953
    %v1025 = vadd.f32 %v905, %v953
    %v1026 = vadd.f32 %v906, %v955
    %v1027 = vadd.f32 %v907, %v955
    %v1028 = vadd.f32 %v908, %v957
    %v1029 = vadd.f32 %v909, %v957
    %v1030 = vadd.f32 %v910, %v959
    %v1031 = vadd.f32 %v911, %v959
    %v1032 = vadd.f32 %v912, %v961
    %v1033 = vadd.f32 %v913, %v961
    %v1034 = vadd.f32 %v914, %v963
    %v1035 = vadd.f32 %v915, %v963
    %v1036 = vadd.f32 %v916, %v965
    %v1037 = vadd.f32 %v917, %v965
    %v1038 = vadd.f32 %v918, %v967
    %v1039 = vadd.f32 %v919, %v967
    %v1040 = vadd.f32 %v920, %v969
    %v1041 = vadd.f32 %v921, %v969
    %v1042 = vadd.f32 %v922, %v971
    %v1043 = vadd.f32 %v923, %v971
    %v1044 = vadd.f32 %v924, %v973
    %v1045 = vadd.f32 %v925, %v973
    %v1046 = vadd.f32 %v926, %v975
    %v1047 = vadd.f32 %v927, %v975
    %v1048 = vadd.f32 %v928, %v977
    %v1049 = vadd.f32 %v929, %v977
    %v1050 = vadd.f32 %v930, %v979
    %v1051 = vadd.f32 %v931, %v979
    %v1052 = vadd.f32 %v932, %v981
    %v1053 = vadd.f32 %v933, %v981
    %v1054 = vadd.f32 %v934, %v983
    %v1055 = vadd.f32 %v935, %v983
    %v1056 = vld [vmem:[#allocation2 + $0x10] sm:$0xfe]
    %v1057 = vld [vmem:[#allocation2 + $0x18] sm:$0xfe]
    %v1058 = vld [vmem:[#allocation2 + $0x30] sm:$0x1]
    %v1059 = vld [vmem:[#allocation2 + $0x38] sm:$0x1]
    %v1060 = vld [vmem:[#allocation2 + $0x50] sm:$0xfe]
    %v1061 = vld [vmem:[#allocation2 + $0x58] sm:$0xfe]
    %v1062 = vld [vmem:[#allocation2 + $0x70] sm:$0x1]
    %v1063 = vld [vmem:[#allocation2 + $0x78] sm:$0x1]
    %v1064 = vld [vmem:[#allocation2 + $0x90] sm:$0xfe]
    %v1065 = vld [vmem:[#allocation2 + $0x98] sm:$0xfe]
    %v1066 = vld [vmem:[#allocation2 + $0xb0] sm:$0x1]
    %v1067 = vld [vmem:[#allocation2 + $0xb8] sm:$0x1]
    %v1068 = vld [vmem:[#allocation2 + $0xd0] sm:$0xfe]
    %v1069 = vld [vmem:[#allocation2 + $0xd8] sm:$0xfe]
    %v1070 = vld [vmem:[#allocation2 + $0xf0] sm:$0x1]
    %v1071 = vld [vmem:[#allocation2 + $0xf8] sm:$0x1]
    %v1072 = vld [vmem:[#allocation2 + $0x110] sm:$0xfe]
    %v1073 = vld [vmem:[#allocation2 + $0x118] sm:$0xfe]
    %v1074 = vld [vmem:[#allocation2 + $0x130] sm:$0x1]
    %v1075 = vld [vmem:[#allocation2 + $0x138] sm:$0x1]
    %v1076 = vld [vmem:[#allocation2 + $0x150] sm:$0xfe]
    %v1077 = vld [vmem:[#allocation2 + $0x158] sm:$0xfe]
    %v1078 = vld [vmem:[#allocation2 + $0x170] sm:$0x1]
    %v1079 = vld [vmem:[#allocation2 + $0x178] sm:$0x1]
    %v1080 = vld [vmem:[#allocation2 + $0x190] sm:$0xfe]
    %v1081 = vld [vmem:[#allocation2 + $0x198] sm:$0xfe]
    %v1082 = vld [vmem:[#allocation2 + $0x1b0] sm:$0x1]
    %v1083 = vld [vmem:[#allocation2 + $0x1b8] sm:$0x1]
    %v1084 = vld [vmem:[#allocation2 + $0x1d0] sm:$0xfe]
    %v1085 = vld [vmem:[#allocation2 + $0x1d8] sm:$0xfe]
    %v1086 = vld [vmem:[#allocation2 + $0x1f0] sm:$0x1]
    %v1087 = vld [vmem:[#allocation2 + $0x1f8] sm:$0x1]
    %v1088 = vmul.f32 %v1056, 0.044919226
    %v1089 = vmul.f32 %v1057, 0.044919226
    %v1090 = vmul.f32 %v551, 0.044919226
    %v1091 = vmul.f32 %v552, 0.044919226
    %v1092 = vmul.f32 %v1058, 0.044919226
    %v1093 = vmul.f32 %v1059, 0.044919226
    %v1094 = vmul.f32 %v1060, 0.044919226
    %v1095 = vmul.f32 %v1061, 0.044919226
    %v1096 = vmul.f32 %v553, 0.044919226
    %v1097 = vmul.f32 %v554, 0.044919226
    %v1098 = vmul.f32 %v1062, 0.044919226
    %v1099 = vmul.f32 %v1063, 0.044919226
    %v1100 = vmul.f32 %v1064, 0.044919226
    %v1101 = vmul.f32 %v1065, 0.044919226
    %v1102 = vmul.f32 %v555, 0.044919226
    %v1103 = vmul.f32 %v556, 0.044919226
    %v1104 = vmul.f32 %v1066, 0.044919226
    %v1105 = vmul.f32 %v1067, 0.044919226
    %v1106 = vmul.f32 %v1068, 0.044919226
    %v1107 = vmul.f32 %v1069, 0.044919226
    %v1108 = vmul.f32 %v557, 0.044919226
    %v1109 = vmul.f32 %v558, 0.044919226
    %v1110 = vmul.f32 %v1070, 0.044919226
    %v1111 = vmul.f32 %v1071, 0.044919226
    %v1112 = vmul.f32 %v1072, 0.044919226
    %v1113 = vmul.f32 %v1073, 0.044919226
    %v1114 = vmul.f32 %v559, 0.044919226
    %v1115 = vmul.f32 %v560, 0.044919226
    %v1116 = vmul.f32 %v1074, 0.044919226
    %v1117 = vmul.f32 %v1075, 0.044919226
    %v1118 = vmul.f32 %v1076, 0.044919226
    %v1119 = vmul.f32 %v1077, 0.044919226
    %v1120 = vmul.f32 %v561, 0.044919226
    %v1121 = vmul.f32 %v562, 0.044919226
    %v1122 = vmul.f32 %v1078, 0.044919226
    %v1123 = vmul.f32 %v1079, 0.044919226
    %v1124 = vmul.f32 %v1080, 0.044919226
    %v1125 = vmul.f32 %v1081, 0.044919226
    %v1126 = vmul.f32 %v563, 0.044919226
    %v1127 = vmul.f32 %v564, 0.044919226
    %v1128 = vmul.f32 %v1082, 0.044919226
    %v1129 = vmul.f32 %v1083, 0.044919226
    %v1130 = vmul.f32 %v1084, 0.044919226
    %v1131 = vmul.f32 %v1085, 0.044919226
    %v1132 = vmul.f32 %v565, 0.044919226
    %v1133 = vmul.f32 %v566, 0.044919226
    %v1134 = vmul.f32 %v1086, 0.044919226
    %v1135 = vmul.f32 %v1087, 0.044919226
    %vm1184 = vcmask 1045504
    %v1185 = vrot.slane %v1088, 2
    %v1186 = vrot.slane %v1089, 2
    %v1187 = vrot.slane %v1090, 2
    %v1188 = vsel %vm1184, %v1185, %v1187
    %v1189 = vrot.slane %v1091, 2
    %v1190 = vsel %vm1184, %v1186, %v1189
    %v1191 = vrot.slane %v1092, 2
    %v1192 = vsel %vm1184, %v1187, %v1191
    %v1193 = vrot.slane %v1093, 2
    %v1194 = vsel %vm1184, %v1189, %v1193
    %v1195 = vrot.slane %v1094, 2
    %v1196 = vrot.slane %v1095, 2
    %v1197 = vrot.slane %v1096, 2
    %v1198 = vsel %vm1184, %v1195, %v1197
    %v1199 = vrot.slane %v1097, 2
    %v1200 = vsel %vm1184, %v1196, %v1199
    %v1201 = vrot.slane %v1098, 2
    %v1202 = vsel %vm1184, %v1197, %v1201
    %v1203 = vrot.slane %v1099, 2
    %v1204 = vsel %vm1184, %v1199, %v1203
    %v1205 = vrot.slane %v1100, 2
    %v1206 = vrot.slane %v1101, 2
    %v1207 = vrot.slane %v1102, 2
    %v1208 = vsel %vm1184, %v1205, %v1207
    %v1209 = vrot.slane %v1103, 2
    %v1210 = vsel %vm1184, %v1206, %v1209
    %v1211 = vrot.slane %v1104, 2
    %v1212 = vsel %vm1184, %v1207, %v1211
    %v1213 = vrot.slane %v1105, 2
    %v1214 = vsel %vm1184, %v1209, %v1213
    %v1215 = vrot.slane %v1106, 2
    %v1216 = vrot.slane %v1107, 2
    %v1217 = vrot.slane %v1108, 2
    %v1218 = vsel %vm1184, %v1215, %v1217
    %v1219 = vrot.slane %v1109, 2
    %v1220 = vsel %vm1184, %v1216, %v1219
    %v1221 = vrot.slane %v1110, 2
    %v1222 = vsel %vm1184, %v1217, %v1221
    %v1223 = vrot.slane %v1111, 2
    %v1224 = vsel %vm1184, %v1219, %v1223
    %v1225 = vrot.slane %v1112, 2
    %v1226 = vrot.slane %v1113, 2
    %v1227 = vrot.slane %v1114, 2
    %v1228 = vsel %vm1184, %v1225, %v1227
    %v1229 = vrot.slane %v1115, 2
    %v1230 = vsel %vm1184, %v1226, %v1229
    %v1231 = vrot.slane %v1116, 2
    %v1232 = vsel %vm1184, %v1227, %v1231
    %v1233 = vrot.slane %v1117, 2
    %v1234 = vsel %vm1184, %v1229, %v1233
    %v1235 = vrot.slane %v1118, 2
    %v1236 = vrot.slane %v1119, 2
    %v1237 = vrot.slane %v1120, 2
    %v1238 = vsel %vm1184, %v1235, %v1237
    %v1239 = vrot.slane %v1121, 2
    %v1240 = vsel %vm1184, %v1236, %v1239
    %v1241 = vrot.slane %v1122, 2
    %v1242 = vsel %vm1184, %v1237, %v1241
    %v1243 = vrot.slane %v1123, 2
    %v1244 = vsel %vm1184, %v1239, %v1243
    %v1245 = vrot.slane %v1124, 2
    %v1246 = vrot.slane %v1125, 2
    %v1247 = vrot.slane %v1126, 2
    %v1248 = vsel %vm1184, %v1245, %v1247
    %v1249 = vrot.slane %v1127, 2
    %v1250 = vsel %vm1184, %v1246, %v1249
    %v1251 = vrot.slane %v1128, 2
    %v1252 = vsel %vm1184, %v1247, %v1251
    %v1253 = vrot.slane %v1129, 2
    %v1254 = vsel %vm1184, %v1249, %v1253
    %v1255 = vrot.slane %v1130, 2
    %v1256 = vrot.slane %v1131, 2
    %v1257 = vrot.slane %v1132, 2
    %v1258 = vsel %vm1184, %v1255, %v1257
    %v1259 = vrot.slane %v1133, 2
    %v1260 = vsel %vm1184, %v1256, %v1259
    %v1261 = vrot.slane %v1134, 2
    %v1262 = vsel %vm1184, %v1257, %v1261
    %v1263 = vrot.slane %v1135, 2
    %v1264 = vsel %vm1184, %v1259, %v1263
    %v1313 = vadd.f32 %v1008, %v1185
    %v1314 = vadd.f32 %v1009, %v1186
    %v1315 = vadd.f32 %v1010, %v1188
    %v1316 = vadd.f32 %v1011, %v1190
    %v1317 = vadd.f32 %v1012, %v1192
    %v1318 = vadd.f32 %v1013, %v1194
    %v1319 = vadd.f32 %v1014, %v1195
    %v1320 = vadd.f32 %v1015, %v1196
    %v1321 = vadd.f32 %v1016, %v1198
    %v1322 = vadd.f32 %v1017, %v1200
    %v1323 = vadd.f32 %v1018, %v1202
    %v1324 = vadd.f32 %v1019, %v1204
    %v1325 = vadd.f32 %v1020, %v1205
    %v1326 = vadd.f32 %v1021, %v1206
    %v1327 = vadd.f32 %v1022, %v1208
    %v1328 = vadd.f32 %v1023, %v1210
    %v1329 = vadd.f32 %v1024, %v1212
    %v1330 = vadd.f32 %v1025, %v1214
    %v1331 = vadd.f32 %v1026, %v1215
    %v1332 = vadd.f32 %v1027, %v1216
    %v1333 = vadd.f32 %v1028, %v1218
    %v1334 = vadd.f32 %v1029, %v1220
    %v1335 = vadd.f32 %v1030, %v1222
    %v1336 = vadd.f32 %v1031, %v1224
    %v1337 = vadd.f32 %v1032, %v1225
    %v1338 = vadd.f32 %v1033, %v1226
    %v1339 = vadd.f32 %v1034, %v1228
    %v1340 = vadd.f32 %v1035, %v1230
    %v1341 = vadd.f32 %v1036, %v1232
    %v1342 = vadd.f32 %v1037, %v1234
    %v1343 = vadd.f32 %v1038, %v1235
    %v1344 = vadd.f32 %v1039, %v1236
    %v1345 = vadd.f32 %v1040, %v1238
    %v1346 = vadd.f32 %v1041, %v1240
    %v1347 = vadd.f32 %v1042, %v1242
    %v1348 = vadd.f32 %v1043, %v1244
    %v1349 = vadd.f32 %v1044, %v1245
    %v1350 = vadd.f32 %v1045, %v1246
    %v1351 = vadd.f32 %v1046, %v1248
    %v1352 = vadd.f32 %v1047, %v1250
    %v1353 = vadd.f32 %v1048, %v1252
    %v1354 = vadd.f32 %v1049, %v1254
    %v1355 = vadd.f32 %v1050, %v1255
    %v1356 = vadd.f32 %v1051, %v1256
    %v1357 = vadd.f32 %v1052, %v1258
    %v1358 = vadd.f32 %v1053, %v1260
    %v1359 = vadd.f32 %v1054, %v1262
    %v1360 = vadd.f32 %v1055, %v1264
    %v1361 = vmul.f32 %v1057, 0.12210312
    %v1362 = vmul.f32 %v1059, 0.12210312
    %v1363 = vmul.f32 %v1061, 0.12210312
    %v1364 = vmul.f32 %v1063, 0.12210312
    %v1365 = vmul.f32 %v1065, 0.12210312
    %v1366 = vmul.f32 %v1067, 0.12210312
    %v1367 = vmul.f32 %v1069, 0.12210312
    %v1368 = vmul.f32 %v1071, 0.12210312
    %v1369 = vmul.f32 %v1073, 0.12210312
    %v1370 = vmul.f32 %v1075, 0.12210312
    %v1371 = vmul.f32 %v1077, 0.12210312
    %v1372 = vmul.f32 %v1079, 0.12210312
    %v1373 = vmul.f32 %v1081, 0.12210312
    %v1374 = vmul.f32 %v1083, 0.12210312
    %v1375 = vmul.f32 %v1085, 0.12210312
    %v1376 = vmul.f32 %v1087, 0.12210312
    %v1393 = vrot.slane %v1361, 2
    %v1394 = vrot.slane %v569, 2
    %v1395 = vsel %vm1184, %v1393, %v1394
    %v1396 = vrot.slane %v1362, 2
    %v1397 = vsel %vm1184, %v1394, %v1396
    %v1398 = vrot.slane %v1363, 2
    %v1399 = vrot.slane %v572, 2
    %v1400 = vsel %vm1184, %v1398, %v1399
    %v1401 = vrot.slane %v1364, 2
    %v1402 = vsel %vm1184, %v1399, %v1401
    %v1403 = vrot.slane %v1365, 2
    %v1404 = vrot.slane %v575, 2
    %v1405 = vsel %vm1184, %v1403, %v1404
    %v1406 = vrot.slane %v1366, 2
    %v1407 = vsel %vm1184, %v1404, %v1406
    %v1408 = vrot.slane %v1367, 2
    %v1409 = vrot.slane %v578, 2
    %v1410 = vsel %vm1184, %v1408, %v1409
    %v1411 = vrot.slane %v1368, 2
    %v1412 = vsel %vm1184, %v1409, %v1411
    %v1413 = vrot.slane %v1369, 2
    %v1414 = vrot.slane %v581, 2
    %v1415 = vsel %vm1184, %v1413, %v1414
    %v1416 = vrot.slane %v1370, 2
    %v1417 = vsel %vm1184, %v1414, %v1416
    %v1418 = vrot.slane %v1371, 2
    %v1419 = vrot.slane %v584, 2
    %v1420 = vsel %vm1184, %v1418, %v1419
    %v1421 = vrot.slane %v1372, 2
    %v1422 = vsel %vm1184, %v1419, %v1421
    %v1423 = vrot.slane %v1373, 2
    %v1424 = vrot.slane %v587, 2
    %v1425 = vsel %vm1184, %v1423, %v1424
    %v1426 = vrot.slane %v1374, 2
    %v1427 = vsel %vm1184, %v1424, %v1426
    %v1428 = vrot.slane %v1375, 2
    %v1429 = vrot.slane %v590, 2
    %v1430 = vsel %vm1184, %v1428, %v1429
    %v1431 = vrot.slane %v1376, 2
    %v1432 = vsel %vm1184, %v1429, %v1431
    %1433 = vrot.lane.b32.xlu0 %v1393, 127
    %v1434 = vpop.permute.xlu0 %1433
    %1435 = vrot.lane.b32.xlu0 %v1395, 127
    %v1436 = vpop.permute.xlu0 %1435
    %1437 = vrot.lane.b32.xlu0 %v1397, 127
    %v1438 = vpop.permute.xlu0 %1437
    %1439 = vrot.lane.b32.xlu0 %v1398, 127
    %v1440 = vpop.permute.xlu0 %1439
    %1441 = vrot.lane.b32.xlu0 %v1400, 127
    %v1442 = vpop.permute.xlu0 %1441
    %1443 = vrot.lane.b32.xlu0 %v1402, 127
    %v1444 = vpop.permute.xlu0 %1443
    %1445 = vrot.lane.b32.xlu0 %v1403, 127
    %v1446 = vpop.permute.xlu0 %1445
    %1447 = vrot.lane.b32.xlu0 %v1405, 127
    %v1448 = vpop.permute.xlu0 %1447
    %1449 = vrot.lane.b32.xlu0 %v1407, 127
    %v1450 = vpop.permute.xlu0 %1449
    %1451 = vrot.lane.b32.xlu0 %v1408, 127
    %v1452 = vpop.permute.xlu0 %1451
    %1453 = vrot.lane.b32.xlu0 %v1410, 127
    %v1454 = vpop.permute.xlu0 %1453
    %1455 = vrot.lane.b32.xlu0 %v1412, 127
    %v1456 = vpop.permute.xlu0 %1455
    %1457 = vrot.lane.b32.xlu0 %v1413, 127
    %v1458 = vpop.permute.xlu0 %1457
    %1459 = vrot.lane.b32.xlu0 %v1415, 127
    %v1460 = vpop.permute.xlu0 %1459
    %1461 = vrot.lane.b32.xlu0 %v1417, 127
    %v1462 = vpop.permute.xlu0 %1461
    %1463 = vrot.lane.b32.xlu0 %v1418, 127
    %v1464 = vpop.permute.xlu0 %1463
    %1465 = vrot.lane.b32.xlu0 %v1420, 127
    %v1466 = vpop.permute.xlu0 %1465
    %1467 = vrot.lane.b32.xlu0 %v1422, 127
    %v1468 = vpop.permute.xlu0 %1467
    %1469 = vrot.lane.b32.xlu0 %v1423, 127
    %v1470 = vpop.permute.xlu0 %1469
    %1471 = vrot.lane.b32.xlu0 %v1425, 127
    %v1472 = vpop.permute.xlu0 %1471
    %1473 = vrot.lane.b32.xlu0 %v1427, 127
    %v1474 = vpop.permute.xlu0 %1473
    %1475 = vrot.lane.b32.xlu0 %v1428, 127
    %v1476 = vpop.permute.xlu0 %1475
    %1477 = vrot.lane.b32.xlu0 %v1430, 127
    %v1478 = vpop.permute.xlu0 %1477
    %1479 = vrot.lane.b32.xlu0 %v1432, 127
    %v1480 = vpop.permute.xlu0 %1479
    %v1505 = vadd.f32 %v1313, %v1434
    %v1506 = vadd.f32 %v1314, %v1434
    %v1507 = vadd.f32 %v1315, %v1436
    %v1508 = vadd.f32 %v1316, %v1436
    %v1509 = vadd.f32 %v1317, %v1438
    %v1510 = vadd.f32 %v1318, %v1438
    %v1511 = vadd.f32 %v1319, %v1440
    %v1512 = vadd.f32 %v1320, %v1440
    %v1513 = vadd.f32 %v1321, %v1442
    %v1514 = vadd.f32 %v1322, %v1442
    %v1515 = vadd.f32 %v1323, %v1444
    %v1516 = vadd.f32 %v1324, %v1444
    %v1517 = vadd.f32 %v1325, %v1446
    %v1518 = vadd.f32 %v1326, %v1446
    %v1519 = vadd.f32 %v1327, %v1448
    %v1520 = vadd.f32 %v1328, %v1448
    %v1521 = vadd.f32 %v1329, %v1450
    %v1522 = vadd.f32 %v1330, %v1450
    %v1523 = vadd.f32 %v1331, %v1452
    %v1524 = vadd.f32 %v1332, %v1452
    %v1525 = vadd.f32 %v1333, %v1454
    %v1526 = vadd.f32 %v1334, %v1454
    %v1527 = vadd.f32 %v1335, %v1456
    %v1528 = vadd.f32 %v1336, %v1456
    %v1529 = vadd.f32 %v1337, %v1458
    %v1530 = vadd.f32 %v1338, %v1458
    %v1531 = vadd.f32 %v1339, %v1460
    %v1532 = vadd.f32 %v1340, %v1460
    %v1533 = vadd.f32 %v1341, %v1462
    %v1534 = vadd.f32 %v1342, %v1462
    %v1535 = vadd.f32 %v1343, %v1464
    %v1536 = vadd.f32 %v1344, %v1464
    %v1537 = vadd.f32 %v1345, %v1466
    %v1538 = vadd.f32 %v1346, %v1466
    %v1539 = vadd.f32 %v1347, %v1468
    %v1540 = vadd.f32 %v1348, %v1468
    %v1541 = vadd.f32 %v1349, %v1470
    %v1542 = vadd.f32 %v1350, %v1470
    %v1543 = vadd.f32 %v1351, %v1472
    %v1544 = vadd.f32 %v1352, %v1472
    %v1545 = vadd.f32 %v1353, %v1474
    %v1546 = vadd.f32 %v1354, %v1474
    %v1547 = vadd.f32 %v1355, %v1476
    %v1548 = vadd.f32 %v1356, %v1476
    %v1549 = vadd.f32 %v1357, %v1478
    %v1550 = vadd.f32 %v1358, %v1478
    %v1551 = vadd.f32 %v1359, %v1480
    %v1552 = vadd.f32 %v1360, %v1480
    %1553 = vrot.lane.b32.xlu0 %v1186, 126
    %v1554 = vpop.permute.xlu0 %1553
    %1555 = vrot.lane.b32.xlu0 %v1190, 126
    %v1556 = vpop.permute.xlu0 %1555
    %1557 = vrot.lane.b32.xlu0 %v1194, 126
    %v1558 = vpop.permute.xlu0 %1557
    %1559 = vrot.lane.b32.xlu0 %v1196, 126
    %v1560 = vpop.permute.xlu0 %1559
    %1561 = vrot.lane.b32.xlu0 %v1200, 126
    %v1562 = vpop.permute.xlu0 %1561
    %1563 = vrot.lane.b32.xlu0 %v1204, 126
    %v1564 = vpop.permute.xlu0 %1563
    %1565 = vrot.lane.b32.xlu0 %v1206, 126
    %v1566 = vpop.permute.xlu0 %1565
    %1567 = vrot.lane.b32.xlu0 %v1210, 126
    %v1568 = vpop.permute.xlu0 %1567
    %1569 = vrot.lane.b32.xlu0 %v1214, 126
    %v1570 = vpop.permute.xlu0 %1569
    %1571 = vrot.lane.b32.xlu0 %v1216, 126
    %v1572 = vpop.permute.xlu0 %1571
    %1573 = vrot.lane.b32.xlu0 %v1220, 126
    %v1574 = vpop.permute.xlu0 %1573
    %1575 = vrot.lane.b32.xlu0 %v1224, 126
    %v1576 = vpop.permute.xlu0 %1575
    %1577 = vrot.lane.b32.xlu0 %v1226, 126
    %v1578 = vpop.permute.xlu0 %1577
    %1579 = vrot.lane.b32.xlu0 %v1230, 126
    %v1580 = vpop.permute.xlu0 %1579
    %1581 = vrot.lane.b32.xlu0 %v1234, 126
    %v1582 = vpop.permute.xlu0 %1581
    %1583 = vrot.lane.b32.xlu0 %v1236, 126
    %v1584 = vpop.permute.xlu0 %1583
    %1585 = vrot.lane.b32.xlu0 %v1240, 126
    %v1586 = vpop.permute.xlu0 %1585
    %1587 = vrot.lane.b32.xlu0 %v1244, 126
    %v1588 = vpop.permute.xlu0 %1587
    %1589 = vrot.lane.b32.xlu0 %v1246, 126
    %v1590 = vpop.permute.xlu0 %1589
    %1591 = vrot.lane.b32.xlu0 %v1250, 126
    %v1592 = vpop.permute.xlu0 %1591
    %1593 = vrot.lane.b32.xlu0 %v1254, 126
    %v1594 = vpop.permute.xlu0 %1593
    %1595 = vrot.lane.b32.xlu0 %v1256, 126
    %v1596 = vpop.permute.xlu0 %1595
    %1597 = vrot.lane.b32.xlu0 %v1260, 126
    %v1598 = vpop.permute.xlu0 %1597
    %1599 = vrot.lane.b32.xlu0 %v1264, 126
    %v1600 = vpop.permute.xlu0 %1599
    %v1625 = vadd.f32 %v1505, %v1554
    %v1626 = vadd.f32 %v1506, %v1554
    %v1627 = vadd.f32 %v1507, %v1556
    %v1628 = vadd.f32 %v1508, %v1556
    %v1629 = vadd.f32 %v1509, %v1558
    %v1630 = vadd.f32 %v1510, %v1558
    %v1631 = vadd.f32 %v1511, %v1560
    %v1632 = vadd.f32 %v1512, %v1560
    %v1633 = vadd.f32 %v1513, %v1562
    %v1634 = vadd.f32 %v1514, %v1562
    %v1635 = vadd.f32 %v1515, %v1564
    %v1636 = vadd.f32 %v1516, %v1564
    %v1637 = vadd.f32 %v1517, %v1566
    %v1638 = vadd.f32 %v1518, %v1566
    %v1639 = vadd.f32 %v1519, %v1568
    %v1640 = vadd.f32 %v1520, %v1568
    %v1641 = vadd.f32 %v1521, %v1570
    %v1642 = vadd.f32 %v1522, %v1570
    %v1643 = vadd.f32 %v1523, %v1572
    %v1644 = vadd.f32 %v1524, %v1572
    %v1645 = vadd.f32 %v1525, %v1574
    %v1646 = vadd.f32 %v1526, %v1574
    %v1647 = vadd.f32 %v1527, %v1576
    %v1648 = vadd.f32 %v1528, %v1576
    %v1649 = vadd.f32 %v1529, %v1578
    %v1650 = vadd.f32 %v1530, %v1578
    %v1651 = vadd.f32 %v1531, %v1580
    %v1652 = vadd.f32 %v1532, %v1580
    %v1653 = vadd.f32 %v1533, %v1582
    %v1654 = vadd.f32 %v1534, %v1582
    %v1655 = vadd.f32 %v1535, %v1584
    %v1656 = vadd.f32 %v1536, %v1584
    %v1657 = vadd.f32 %v1537, %v1586
    %v1658 = vadd.f32 %v1538, %v1586
    %v1659 = vadd.f32 %v1539, %v1588
    %v1660 = vadd.f32 %v1540, %v1588
    %v1661 = vadd.f32 %v1541, %v1590
    %v1662 = vadd.f32 %v1542, %v1590
    %v1663 = vadd.f32 %v1543, %v1592
    %v1664 = vadd.f32 %v1544, %v1592
    %v1665 = vadd.f32 %v1545, %v1594
    %v1666 = vadd.f32 %v1546, %v1594
    %v1667 = vadd.f32 %v1547, %v1596
    %v1668 = vadd.f32 %v1548, %v1596
    %v1669 = vadd.f32 %v1549, %v1598
    %v1670 = vadd.f32 %v1550, %v1598
    %v1671 = vadd.f32 %v1551, %v1600
    %v1672 = vadd.f32 %v1552, %v1600
    %1721 = vrot.lane.b32.xlu0 %v1625, 1
    %v1722 = vpop.permute.xlu0 %1721
    %1723 = vrot.lane.b32.xlu0 %v1626, 1
    %v1724 = vpop.permute.xlu0 %1723
    %1725 = vrot.lane.b32.xlu0 %v1627, 1
    %v1726 = vpop.permute.xlu0 %1725
    %1727 = vrot.lane.b32.xlu0 %v1628, 1
    %v1728 = vpop.permute.xlu0 %1727
    %1729 = vrot.lane.b32.xlu0 %v1629, 1
    %v1730 = vpop.permute.xlu0 %1729
    %1731 = vrot.lane.b32.xlu0 %v1630, 1
    %v1732 = vpop.permute.xlu0 %1731
    %1733 = vrot.lane.b32.xlu0 %v1631, 1
    %v1734 = vpop.permute.xlu0 %1733
    %1735 = vrot.lane.b32.xlu0 %v1632, 1
    %v1736 = vpop.permute.xlu0 %1735
    %1737 = vrot.lane.b32.xlu0 %v1633, 1
    %v1738 = vpop.permute.xlu0 %1737
    %1739 = vrot.lane.b32.xlu0 %v1634, 1
    %v1740 = vpop.permute.xlu0 %1739
    %1741 = vrot.lane.b32.xlu0 %v1635, 1
    %v1742 = vpop.permute.xlu0 %1741
    %1743 = vrot.lane.b32.xlu0 %v1636, 1
    %v1744 = vpop.permute.xlu0 %1743
    %1745 = vrot.lane.b32.xlu0 %v1637, 1
    %v1746 = vpop.permute.xlu0 %1745
    %1747 = vrot.lane.b32.xlu0 %v1638, 1
    %v1748 = vpop.permute.xlu0 %1747
    %1749 = vrot.lane.b32.xlu0 %v1639, 1
    %v1750 = vpop.permute.xlu0 %1749
    %1751 = vrot.lane.b32.xlu0 %v1640, 1
    %v1752 = vpop.permute.xlu0 %1751
    %1753 = vrot.lane.b32.xlu0 %v1641, 1
    %v1754 = vpop.permute.xlu0 %1753
    %1755 = vrot.lane.b32.xlu0 %v1642, 1
    %v1756 = vpop.permute.xlu0 %1755
    %1757 = vrot.lane.b32.xlu0 %v1643, 1
    %v1758 = vpop.permute.xlu0 %1757
    %1759 = vrot.lane.b32.xlu0 %v1644, 1
    %v1760 = vpop.permute.xlu0 %1759
    %1761 = vrot.lane.b32.xlu0 %v1645, 1
    %v1762 = vpop.permute.xlu0 %1761
    %1763 = vrot.lane.b32.xlu0 %v1646, 1
    %v1764 = vpop.permute.xlu0 %1763
    %1765 = vrot.lane.b32.xlu0 %v1647, 1
    %v1766 = vpop.permute.xlu0 %1765
    %1767 = vrot.lane.b32.xlu0 %v1648, 1
    %v1768 = vpop.permute.xlu0 %1767
    %1769 = vrot.lane.b32.xlu0 %v1649, 1
    %v1770 = vpop.permute.xlu0 %1769
    %1771 = vrot.lane.b32.xlu0 %v1650, 1
    %v1772 = vpop.permute.xlu0 %1771
    %1773 = vrot.lane.b32.xlu0 %v1651, 1
    %v1774 = vpop.permute.xlu0 %1773
    %1775 = vrot.lane.b32.xlu0 %v1652, 1
    %v1776 = vpop.permute.xlu0 %1775
    %1777 = vrot.lane.b32.xlu0 %v1653, 1
    %v1778 = vpop.permute.xlu0 %1777
    %1779 = vrot.lane.b32.xlu0 %v1654, 1
    %v1780 = vpop.permute.xlu0 %1779
    %1781 = vrot.lane.b32.xlu0 %v1655, 1
    %v1782 = vpop.permute.xlu0 %1781
    %1783 = vrot.lane.b32.xlu0 %v1656, 1
    %v1784 = vpop.permute.xlu0 %1783
    %1785 = vrot.lane.b32.xlu0 %v1657, 1
    %v1786 = vpop.permute.xlu0 %1785
    %1787 = vrot.lane.b32.xlu0 %v1658, 1
    %v1788 = vpop.permute.xlu0 %1787
    %1789 = vrot.lane.b32.xlu0 %v1659, 1
    %v1790 = vpop.permute.xlu0 %1789
    %1791 = vrot.lane.b32.xlu0 %v1660, 1
    %v1792 = vpop.permute.xlu0 %1791
    %1793 = vrot.lane.b32.xlu0 %v1661, 1
    %v1794 = vpop.permute.xlu0 %1793
    %1795 = vrot.lane.b32.xlu0 %v1662, 1
    %v1796 = vpop.permute.xlu0 %1795
    %1797 = vrot.lane.b32.xlu0 %v1663, 1
    %v1798 = vpop.permute.xlu0 %1797
    %1799 = vrot.lane.b32.xlu0 %v1664, 1
    %v1800 = vpop.permute.xlu0 %1799
    %1801 = vrot.lane.b32.xlu0 %v1665, 1
    %v1802 = vpop.permute.xlu0 %1801
    %1803 = vrot.lane.b32.xlu0 %v1666, 1
    %v1804 = vpop.permute.xlu0 %1803
    %1805 = vrot.lane.b32.xlu0 %v1667, 1
    %v1806 = vpop.permute.xlu0 %1805
    %1807 = vrot.lane.b32.xlu0 %v1668, 1
    %v1808 = vpop.permute.xlu0 %1807
    %1809 = vrot.lane.b32.xlu0 %v1669, 1
    %v1810 = vpop.permute.xlu0 %1809
    %1811 = vrot.lane.b32.xlu0 %v1670, 1
    %v1812 = vpop.permute.xlu0 %1811
    %1813 = vrot.lane.b32.xlu0 %v1671, 1
    %v1814 = vpop.permute.xlu0 %1813
    %1815 = vrot.lane.b32.xlu0 %v1672, 1
    %v1816 = vpop.permute.xlu0 %1815
    %vm1817 = vcmask 7168
    %v1818 = vsel %vm1817, %v1722, %v1724
    %v1819 = vsel %vm1817, %v1726, %v1728
    %v1820 = vsel %vm1817, %v1730, %v1732
    %v1821 = vsel %vm1817, %v1734, %v1736
    %v1822 = vsel %vm1817, %v1738, %v1740
    %v1823 = vsel %vm1817, %v1742, %v1744
    %v1824 = vsel %vm1817, %v1746, %v1748
    %v1825 = vsel %vm1817, %v1750, %v1752
    %v1826 = vsel %vm1817, %v1754, %v1756
    %v1827 = vsel %vm1817, %v1758, %v1760
    %v1828 = vsel %vm1817, %v1762, %v1764
    %v1829 = vsel %vm1817, %v1766, %v1768
    %v1830 = vsel %vm1817, %v1770, %v1772
    %v1831 = vsel %vm1817, %v1774, %v1776
    %v1832 = vsel %vm1817, %v1778, %v1780
    %v1833 = vsel %vm1817, %v1782, %v1784
    %v1834 = vsel %vm1817, %v1786, %v1788
    %v1835 = vsel %vm1817, %v1790, %v1792
    %v1836 = vsel %vm1817, %v1794, %v1796
    %v1837 = vsel %vm1817, %v1798, %v1800
    %v1838 = vsel %vm1817, %v1802, %v1804
    %v1839 = vsel %vm1817, %v1806, %v1808
    %v1840 = vsel %vm1817, %v1810, %v1812
    %v1841 = vsel %vm1817, %v1814, %v1816
    %vm1866 = vcmask 130055
    %1867 = vst.msk [vmem:[#allocation6 - $0x7] sm:$0x80] %vm1866, %v1818
    %1868 = vst.msk [vmem:[#allocation6 + $0x1] sm:$0xff] %vm39, %v1819
    %vm1869 = vcmask 129024
    %1870 = vst.msk [vmem:[#allocation6 + $0x9] sm:$0x7f] %vm1869, %v1820
    %1871 = vst.msk [vmem:[#allocation6 + $0x9] sm:$0x80] %vm1866, %v1821
    %1872 = vst.msk [vmem:[#allocation6 + $0x11] sm:$0xff] %vm39, %v1822
    %1873 = vst.msk [vmem:[#allocation6 + $0x19] sm:$0x7f] %vm1869, %v1823
    %1874 = vst.msk [vmem:[#allocation6 + $0x19] sm:$0x80] %vm1866, %v1824
    %1875 = vst.msk [vmem:[#allocation6 + $0x21] sm:$0xff] %vm39, %v1825
    %1876 = vst.msk [vmem:[#allocation6 + $0x29] sm:$0x7f] %vm1869, %v1826
    %1877 = vst.msk [vmem:[#allocation6 + $0x29] sm:$0x80] %vm1866, %v1827
    %1878 = vst.msk [vmem:[#allocation6 + $0x31] sm:$0xff] %vm39, %v1828
    %1879 = vst.msk [vmem:[#allocation6 + $0x39] sm:$0x7f] %vm1869, %v1829
    %1880 = vst.msk [vmem:[#allocation6 + $0x39] sm:$0x80] %vm1866, %v1830
    %1881 = vst.msk [vmem:[#allocation6 + $0x41] sm:$0xff] %vm39, %v1831
    %1882 = vst.msk [vmem:[#allocation6 + $0x49] sm:$0x7f] %vm1869, %v1832
    %1883 = vst.msk [vmem:[#allocation6 + $0x49] sm:$0x80] %vm1866, %v1833
    %1884 = vst.msk [vmem:[#allocation6 + $0x51] sm:$0xff] %vm39, %v1834
    %1885 = vst.msk [vmem:[#allocation6 + $0x59] sm:$0x7f] %vm1869, %v1835
    %1886 = vst.msk [vmem:[#allocation6 + $0x59] sm:$0x80] %vm1866, %v1836
    %1887 = vst.msk [vmem:[#allocation6 + $0x61] sm:$0xff] %vm39, %v1837
    %1888 = vst.msk [vmem:[#allocation6 + $0x69] sm:$0x7f] %vm1869, %v1838
    %1889 = vst.msk [vmem:[#allocation6 + $0x69] sm:$0x80] %vm1866, %v1839
    %1890 = vst.msk [vmem:[#allocation6 + $0x71] sm:$0xff] %vm39, %v1840
    %1891 = vst.msk [vmem:[#allocation6 + $0x79] sm:$0x7f] %vm1869, %v1841
    // Predicated region
    $region10: #{tpu_custom_call.1} parent=1 // pred_check
      _
    $region11: #{tpu_custom_call.1} parent=1 // pred_check_branch
      %1893 = sbr.rel (0) target = $region13
    $region12: #{tpu_custom_call.1} parent=1 // pred_region
      %s1895 = ssub.s32 2048, 2048
      %1896 = vsyncadd [#allocation5], %s1895
      %s1897 = sshll.u32 [#allocation6], 4
      %s1898 = int_to_ptr.vmem [resolvable:$true] %s1897
      %1903 = dma.vmem_to_hbm [thread:$0]  %s1898, 2048, %s1, [#allocation5], 128, 128, 8
    $region13: #{tpu_custom_call.1} parent=1 // pred_fallthru
      _
    // Predicated region
    $region14: #{tpu_custom_call.1} parent=1 // pred_check
      _
    $region15: #{tpu_custom_call.1} parent=1 // pred_check_branch
      %1905 = sbr.rel (0) target = $region17
    $region16: #{tpu_custom_call.1} parent=1 // pred_region
      %1906 = dma.done [#allocation5], 2048
    $region17: #{tpu_custom_call.1} parent=1 // pred_fallthru
      _
    %1907 = vsyncpa [#allocation4], 1
    %1908 = vsyncpa [#allocation5], 1

</llo_original>
